<compile_context>
chip_gen: v6e
topology: v6e:2x2x1
jax: 0.10.0
libtpu: 0.0.40
codegen_flags: <defaults>
</compile_context>

<pallas_src>
import functools

import jax
import jax.numpy as jnp
from jax import lax
from jax.experimental import pallas as pl
from jax.experimental.pallas import tpu as pltpu


# ----------------------------------------------------------------------------
# Pallas kernel: one ResidualAttentionBlock for a block of Nb sequences.
# ----------------------------------------------------------------------------
def residual_block_kernel(
    x_ref,                       # (Nb, L, D)   activations (f32)
    ln1w_ref, ln1b_ref,          # (1, D)       f32
    wqkv_ref, bqkv_ref,          # (D, 3D) bf16, (1, 3D) f32
    wo_ref, bo_ref,              # (H, dh, D) bf16, (1, D) f32
    ln2w_ref, ln2b_ref,          # (1, D)       f32
    wfc_ref, bfc_ref,            # (D, 4D) bf16, (1, 4D) f32
    wproj_ref, bproj_ref,        # (4D, D) bf16, (1, D) f32
    o_ref,                       # (Nb, L, D)
    *, heads: int,
):
    xb = x_ref[...].astype(jnp.float32)            # (Nb, L, D)
    Nb, L, D = xb.shape
    H = heads
    dh = D // H
    M = Nb * L
    scale = 1.0 / float(dh) ** 0.5

    def layer_norm(v, w, b):
        # LayerNorm in fp32 (matches the fp16-safe LayerNorm subclass), eps=1e-5
        mu = jnp.mean(v, axis=-1, keepdims=True)
        var = jnp.mean((v - mu) ** 2, axis=-1, keepdims=True)
        return (v - mu) * lax.rsqrt(var + 1e-5) * w + b

    # ---- attention branch ---------------------------------------------------
    h1 = layer_norm(xb, ln1w_ref[0], ln1b_ref[0])                  # f32
    h1b = h1.astype(jnp.bfloat16).reshape(M, D)                    # bf16, tall M
    bqkv = bqkv_ref[0]                                             # hoisted bias
    qkv = jnp.dot(h1b, wqkv_ref[...],
                  preferred_element_type=jnp.float32) + bqkv       # (M, 3D) f32

    # Per-head attention, batched over the Nb sequences via einsum (single
    # leading batch dim, no cross-sequence mixing).  The output projection is
    # accumulated per head against Wo's (dh, D) slab -> no concat, no per-head
    # results kept live.
    # TODO(synk): attn_mask is None in this config; additive-mask support is a
    # single `s = s + mask` before the softmax.
    # TODO(synk): for long L, tile K/V flash-style (online softmax) instead of
    # materializing the full (Nb, L, L) score tensor.
    attn_acc = jnp.zeros((M, D), jnp.float32)
    for hh in range(H):
        q = qkv[:, hh * dh:(hh + 1) * dh] * scale                  # (M, dh) f32
        k = qkv[:, D + hh * dh: D + (hh + 1) * dh]
        v = qkv[:, 2 * D + hh * dh: 2 * D + (hh + 1) * dh]
        qb = q.astype(jnp.bfloat16).reshape(Nb, L, dh)
        kb = k.astype(jnp.bfloat16).reshape(Nb, L, dh)
        vb = v.astype(jnp.bfloat16).reshape(Nb, L, dh)

        s = jnp.einsum("nqd,nkd->nqk", qb, kb,
                       preferred_element_type=jnp.float32)         # (Nb, L, L)
        s = s - jnp.max(s, axis=-1, keepdims=True)
        e = jnp.exp(s)
        inv = pl.reciprocal(jnp.sum(e, axis=-1, keepdims=True), approx=True)
        p = e * inv                                                 # f32 softmax
        oh = jnp.einsum("nqk,nkd->nqd", p.astype(jnp.bfloat16), vb,
                        preferred_element_type=jnp.float32)         # (Nb, L, dh)
        attn_acc = attn_acc + jnp.dot(
            oh.astype(jnp.bfloat16).reshape(M, dh), wo_ref[hh],
            preferred_element_type=jnp.float32)                     # (M, D)

    x2 = xb + (attn_acc + bo_ref[0]).reshape(Nb, L, D)

    # ---- MLP branch (QuickGELU) ---------------------------------------------
    h2 = layer_norm(x2, ln2w_ref[0], ln2b_ref[0])
    h2b = h2.astype(jnp.bfloat16).reshape(M, D)
    f = jnp.dot(h2b, wfc_ref[...],
                preferred_element_type=jnp.float32) + bfc_ref[0]    # (M, 4D) f32
    f = f * jax.nn.sigmoid(1.702 * f)                               # QuickGELU, f32
    mo = jnp.dot(f.astype(jnp.bfloat16), wproj_ref[...],
                 preferred_element_type=jnp.float32) + bproj_ref[0] # (M, D) f32
    x3 = x2 + mo.reshape(Nb, L, D)

    o_ref[...] = x3.astype(o_ref.dtype)


# ----------------------------------------------------------------------------
# pallas_call wrapper
# ----------------------------------------------------------------------------
def residual_block_pallas(x_nld, kparams, heads):
    """x_nld: (N, L, D) f32; kparams: 12 arrays in kernel order (weights bf16)."""
    N, L, D = x_nld.shape
    assert D % heads == 0

    # Batch several sequences per grid step (amortizes per-step overhead and
    # gives sublane-dense tiles).  NOTE: real CLIP widths (512/768/1024) are
    # lane-aligned; the toy D=32 leaves lanes masked, which is accepted here.
    Nb = next(nb for nb in (8, 4, 2, 1) if N % nb == 0)
    grid = (N // Nb,)

    kernel = functools.partial(residual_block_kernel, heads=heads)

    # Explicit VMEM budget: weights (double-buffered by the pipeline),
    # activation blocks and the largest transients (qkv / scores / FFN hidden),
    # plus slack; capped at the v7x physical VMEM.
    param_bytes = sum(int(p.size) * p.dtype.itemsize for p in kparams)
    act_bytes = Nb * L * D * 4
    transient = Nb * L * (3 * D + 4 * D) * 4 + Nb * L * L * 4
    vmem_limit = int(min(64 * (1 << 20),
                         2 * param_bytes + 4 * act_bytes + 4 * transient + (8 << 20)))

    def const_spec(p):
        nd = p.ndim
        return pl.BlockSpec(tuple(p.shape), lambda n, _nd=nd: (0,) * _nd)

    in_specs = [pl.BlockSpec((Nb, L, D), lambda n: (n, 0, 0))]
    in_specs += [const_spec(p) for p in kparams]

    return pl.pallas_call(
        kernel,
        out_shape=jax.ShapeDtypeStruct((N, L, D), x_nld.dtype),
        grid=grid,
        in_specs=in_specs,
        out_specs=pl.BlockSpec((Nb, L, D), lambda n: (n, 0, 0)),
        compiler_params=pltpu.CompilerParams(
            dimension_semantics=("parallel",),
            vmem_limit_bytes=vmem_limit,
        ),
    )(x_nld, *kparams)


# ----------------------------------------------------------------------------
# Parameter init (deterministic, f32 "master" weights) + kernel-param prep
# ----------------------------------------------------------------------------
def init_transformer_params(key, width, layers):
    D = width
    all_params = []
    for _ in range(layers):
        keys = jax.random.split(key, 7)
        key = keys[0]
        p = [
            jnp.ones((1, D), jnp.float32),                                 # ln1 w
            jnp.zeros((1, D), jnp.float32),                                # ln1 b
            jax.random.normal(keys[1], (D, 3 * D), jnp.float32) * 0.02,    # Wqkv (in,out)
            jnp.zeros((1, 3 * D), jnp.float32),                            # bqkv
            jax.random.normal(keys[2], (D, D), jnp.float32) * 0.02,        # Wout
            jnp.zeros((1, D), jnp.float32),                                # bout
            jnp.ones((1, D), jnp.float32),                                 # ln2 w
            jnp.zeros((1, D), jnp.float32),                                # ln2 b
            jax.random.normal(keys[3], (D, 4 * D), jnp.float32) * 0.02,    # Wfc
            jnp.zeros((1, 4 * D), jnp.float32),                            # bfc
            jax.random.normal(keys[4], (4 * D, D), jnp.float32) * 0.02,    # Wproj
            jnp.zeros((1, D), jnp.float32),                                # bproj
        ]
        all_params.append(p)
    return all_params


def prepare_kernel_params(layer_params, heads):
    """Cast weight matrices to bf16 and reshape Wo per head: (H, dh, D)."""
    (ln1w, ln1b, wqkv, bqkv, wo, bo, ln2w, ln2b, wfc, bfc, wproj, bproj) = layer_params
    D = wo.shape[0]
    dh = D // heads
    return [
        ln1w, ln1b,
        wqkv.astype(jnp.bfloat16), bqkv,
        wo.reshape(heads, dh, D).astype(jnp.bfloat16), bo,
        ln2w, ln2b,
        wfc.astype(jnp.bfloat16), bfc,
        wproj.astype(jnp.bfloat16), bproj,
    ]


@functools.partial(jax.jit, static_argnames=("heads",))
def transformer_forward(x_lnd, all_params, *, heads):
    """x_lnd: (L, N, D) — PyTorch MultiheadAttention (seq, batch, embed) layout."""
    x = jnp.transpose(x_lnd, (1, 0, 2))          # -> (N, L, D)
    # TODO(synk): cross-layer weight prefetch (fuse layers into one pallas_call
    # with manual make_async_copy of layer l+1's weights during layer l) to hide
    # HBM weight streaming; not done here to keep the per-layer call simple.
    for p in all_params:
        kp = prepare_kernel_params(p, heads)
        x = residual_block_pallas(x, kp, heads)
    return jnp.transpose(x, (1, 0, 2))           # -> (L, N, D)


# ----------------------------------------------------------------------------
# Pure-JAX f32 reference for correctness check
# ----------------------------------------------------------------------------
def reference_forward(x_lnd, all_params, heads):
    x = jnp.transpose(x_lnd, (1, 0, 2)).astype(jnp.float32)     # (N, L, D)
    N, L, D = x.shape
    dh = D // heads
    scale = 1.0 / (dh ** 0.5)

    def ln(v, w, b):
        mu = jnp.mean(v, -1, keepdims=True)
        var = jnp.mean((v - mu) ** 2, -1, keepdims=True)
        return (v - mu) / jnp.sqrt(var + 1e-5) * w + b

    for (ln1w, ln1b, wqkv, bqkv, wo, bo, ln2w, ln2b, wfc, bfc, wproj, bproj) in all_params:
        h = ln(x, ln1w[0], ln1b[0])
        qkv = h @ wqkv + bqkv[0]
        q, k, v = qkv[..., :D], qkv[..., D:2 * D], qkv[..., 2 * D:]
        q = q.reshape(N, L, heads, dh) * scale
        k = k.reshape(N, L, heads, dh)
        v = v.reshape(N, L, heads, dh)
        s = jnp.einsum("nlhd,nmhd->nhlm", q, k)
        p = jax.nn.softmax(s, axis=-1)
        a = jnp.einsum("nhlm,nmhd->nlhd", p, v).reshape(N, L, D)
        x = x + (a @ wo + bo[0])
        h2 = ln(x, ln2w[0], ln2b[0])
        h2 = h2 @ wfc + bfc[0]
        h2 = h2 * jax.nn.sigmoid(1.702 * h2)
        x = x + (h2 @ wproj + bproj[0])
    return jnp.transpose(x, (1, 0, 2))


if __name__ == "__main__":
    # Small Transformer: width=32, layers=2, heads=4; input (seq=8, batch=2, width=32)
    WIDTH, LAYERS, HEADS = 32, 2, 4
    SEQ, BATCH = 8, 2

    key = jax.random.PRNGKey(0)
    kx, kp = jax.random.split(key)
    x = jax.random.normal(kx, (SEQ, BATCH, WIDTH), jnp.float32)
    params = init_transformer_params(kp, WIDTH, LAYERS)

    out = transformer_forward(x, params, heads=HEADS)
    out = jax.block_until_ready(out)

    ref = reference_forward(x, params, HEADS)
    assert out.shape == (SEQ, BATCH, WIDTH)
    # bf16 matmul operands + approx reciprocal -> relaxed tolerance vs f32 ref.
    assert jnp.allclose(out, ref, atol=2.5e-2, rtol=2.5e-2), "mismatch vs pure-JAX reference"

    print("KERNEL_OK")
</pallas_src>

<mosaic_0001>
module attributes {stable_mosaic.version = 11 : i64} {
  func.func @residual_block_kernel(%arg0: i32, %arg1: memref<2x8x32xf32, #tpu.memory_space<vmem>>, %arg2: memref<1x32xf32, #tpu.memory_space<vmem>>, %arg3: memref<1x32xf32, #tpu.memory_space<vmem>>, %arg4: memref<32x96xbf16, #tpu.memory_space<vmem>>, %arg5: memref<1x96xf32, #tpu.memory_space<vmem>>, %arg6: memref<4x8x32xbf16, #tpu.memory_space<vmem>>, %arg7: memref<1x32xf32, #tpu.memory_space<vmem>>, %arg8: memref<1x32xf32, #tpu.memory_space<vmem>>, %arg9: memref<1x32xf32, #tpu.memory_space<vmem>>, %arg10: memref<32x128xbf16, #tpu.memory_space<vmem>>, %arg11: memref<1x128xf32, #tpu.memory_space<vmem>>, %arg12: memref<128x32xbf16, #tpu.memory_space<vmem>>, %arg13: memref<1x32xf32, #tpu.memory_space<vmem>>, %arg14: memref<2x8x32xf32, #tpu.memory_space<vmem>>) attributes {dimension_semantics = [#tpu.dimension_semantics<parallel>], iteration_bounds = array<i64: 1>, scalar_prefetch = 0 : i64, scratch_operands = 0 : i64, tpu.core_type = #tpu.core_type<tc>, window_params = [{transform_indices = @transform_0, window_bounds = array<i64: 2, 8, 32>}, {pipeline_mode = #tpu.pipeline_mode<synchronous>, transform_indices = @transform_1, window_bounds = array<i64: 1, 32>}, {pipeline_mode = #tpu.pipeline_mode<synchronous>, transform_indices = @transform_2, window_bounds = array<i64: 1, 32>}, {pipeline_mode = #tpu.pipeline_mode<synchronous>, transform_indices = @transform_3, window_bounds = array<i64: 32, 96>}, {pipeline_mode = #tpu.pipeline_mode<synchronous>, transform_indices = @transform_4, window_bounds = array<i64: 1, 96>}, {pipeline_mode = #tpu.pipeline_mode<synchronous>, transform_indices = @transform_5, window_bounds = array<i64: 4, 8, 32>}, {pipeline_mode = #tpu.pipeline_mode<synchronous>, transform_indices = @transform_6, window_bounds = array<i64: 1, 32>}, {pipeline_mode = #tpu.pipeline_mode<synchronous>, transform_indices = @transform_7, window_bounds = array<i64: 1, 32>}, {pipeline_mode = #tpu.pipeline_mode<synchronous>, transform_indices = @transform_8, window_bounds = array<i64: 1, 32>}, {pipeline_mode = #tpu.pipeline_mode<synchronous>, transform_indices = @transform_9, window_bounds = array<i64: 32, 128>}, {pipeline_mode = #tpu.pipeline_mode<synchronous>, transform_indices = @transform_10, window_bounds = array<i64: 1, 128>}, {pipeline_mode = #tpu.pipeline_mode<synchronous>, transform_indices = @transform_11, window_bounds = array<i64: 128, 32>}, {pipeline_mode = #tpu.pipeline_mode<synchronous>, transform_indices = @transform_12, window_bounds = array<i64: 1, 32>}, {transform_indices = @transform_13, window_bounds = array<i64: 2, 8, 32>}]} {
    %c0 = arith.constant 0 : index
    %c0_0 = arith.constant 0 : index
    %c0_1 = arith.constant 0 : index
    %0 = vector.load %arg1[%c0, %c0_0, %c0_1] : memref<2x8x32xf32, #tpu.memory_space<vmem>>, vector<2x8x32xf32>
    %c0_2 = arith.constant 0 : index
    %c0_3 = arith.constant 0 : index
    %1 = vector.load %arg2[%c0_2, %c0_3] : memref<1x32xf32, #tpu.memory_space<vmem>>, vector<1x32xf32>
    %2 = vector.shape_cast %1 : vector<1x32xf32> to vector<32xf32>
    %c0_4 = arith.constant 0 : index
    %c0_5 = arith.constant 0 : index
    %3 = vector.load %arg3[%c0_4, %c0_5] : memref<1x32xf32, #tpu.memory_space<vmem>>, vector<1x32xf32>
    %4 = vector.shape_cast %3 : vector<1x32xf32> to vector<32xf32>
    %cst = arith.constant dense<0.000000e+00> : vector<2x8xf32>
    %5 = vector.multi_reduction <add>, %0, %cst [2] : vector<2x8x32xf32> to vector<2x8xf32>
    %6 = vector.shape_cast %5 : vector<2x8xf32> to vector<2x8x1xf32>
    %cst_6 = arith.constant 3.200000e+01 : f32
    %7 = vector.broadcast %cst_6 : f32 to vector<2x8x1xf32>
    %8 = arith.divf %6, %7 : vector<2x8x1xf32>
    %9 = vector.broadcast %8 : vector<2x8x1xf32> to vector<2x8x32xf32>
    %10 = arith.subf %0, %9 : vector<2x8x32xf32>
    %11 = arith.mulf %10, %10 : vector<2x8x32xf32>
    %cst_7 = arith.constant dense<0.000000e+00> : vector<2x8xf32>
    %12 = vector.multi_reduction <add>, %11, %cst_7 [2] : vector<2x8x32xf32> to vector<2x8xf32>
    %13 = vector.shape_cast %12 : vector<2x8xf32> to vector<2x8x1xf32>
    %cst_8 = arith.constant 3.200000e+01 : f32
    %14 = vector.broadcast %cst_8 : f32 to vector<2x8x1xf32>
    %15 = arith.divf %13, %14 : vector<2x8x1xf32>
    %16 = vector.broadcast %8 : vector<2x8x1xf32> to vector<2x8x32xf32>
    %17 = arith.subf %0, %16 : vector<2x8x32xf32>
    %cst_9 = arith.constant 9.99999974E-6 : f32
    %18 = vector.broadcast %cst_9 : f32 to vector<2x8x1xf32>
    %19 = arith.addf %15, %18 : vector<2x8x1xf32>
    %20 = math.rsqrt %19 : vector<2x8x1xf32>
    %21 = vector.broadcast %20 : vector<2x8x1xf32> to vector<2x8x32xf32>
    %22 = arith.mulf %17, %21 : vector<2x8x32xf32>
    %23 = vector.shape_cast %2 : vector<32xf32> to vector<1x1x32xf32>
    %24 = vector.broadcast %23 : vector<1x1x32xf32> to vector<2x8x32xf32>
    %25 = arith.mulf %22, %24 : vector<2x8x32xf32>
    %26 = vector.shape_cast %4 : vector<32xf32> to vector<1x1x32xf32>
    %27 = vector.broadcast %26 : vector<1x1x32xf32> to vector<2x8x32xf32>
    %28 = arith.addf %25, %27 : vector<2x8x32xf32>
    %29 = arith.truncf %28 : vector<2x8x32xf32> to vector<2x8x32xbf16>
    %30 = vector.shape_cast %29 : vector<2x8x32xbf16> to vector<16x32xbf16>
    %c0_10 = arith.constant 0 : index
    %c0_11 = arith.constant 0 : index
    %31 = vector.load %arg5[%c0_10, %c0_11] : memref<1x96xf32, #tpu.memory_space<vmem>>, vector<1x96xf32>
    %32 = vector.shape_cast %31 : vector<1x96xf32> to vector<96xf32>
    %c0_12 = arith.constant 0 : index
    %c0_13 = arith.constant 0 : index
    %33 = vector.load %arg4[%c0_12, %c0_13] : memref<32x96xbf16, #tpu.memory_space<vmem>>, vector<32x96xbf16>
    %cst_14 = arith.constant dense<0.000000e+00> : vector<16x96xf32>
    %34 = tpu.matmul %30, %33, %cst_14 {dimension_numbers = #tpu.dot_dimension_numbers<[1], [0], [0], [1], [0, 0, 1, 1], [], []>} : vector<16x32xbf16>, vector<32x96xbf16>, vector<16x96xf32> -> vector<16x96xf32>
    %35 = vector.shape_cast %32 : vector<96xf32> to vector<1x96xf32>
    %36 = vector.broadcast %35 : vector<1x96xf32> to vector<16x96xf32>
    %37 = arith.addf %34, %36 : vector<16x96xf32>
    %cst_15 = arith.constant 0.000000e+00 : f32
    %38 = vector.broadcast %cst_15 : f32 to vector<16x32xf32>
    %39 = vector.extract_strided_slice %37 {offsets = [0, 0], sizes = [16, 8], strides = [1, 1]} : vector<16x96xf32> to vector<16x8xf32>
    %cst_16 = arith.constant 0.353553385 : f32
    %40 = vector.broadcast %cst_16 : f32 to vector<16x8xf32>
    %41 = arith.mulf %39, %40 : vector<16x8xf32>
    %42 = vector.extract_strided_slice %37 {offsets = [0, 32], sizes = [16, 8], strides = [1, 1]} : vector<16x96xf32> to vector<16x8xf32>
    %43 = vector.extract_strided_slice %37 {offsets = [0, 64], sizes = [16, 8], strides = [1, 1]} : vector<16x96xf32> to vector<16x8xf32>
    %44 = arith.truncf %41 : vector<16x8xf32> to vector<16x8xbf16>
    %45 = vector.shape_cast %44 : vector<16x8xbf16> to vector<2x8x8xbf16>
    %46 = arith.truncf %42 : vector<16x8xf32> to vector<16x8xbf16>
    %47 = vector.shape_cast %46 : vector<16x8xbf16> to vector<2x8x8xbf16>
    %48 = arith.truncf %43 : vector<16x8xf32> to vector<16x8xbf16>
    %49 = vector.shape_cast %48 : vector<16x8xbf16> to vector<2x8x8xbf16>
    "tpu.trace_start"() <{level = 10 : i32, message = "nqd,nkd->nqk"}> : () -> ()
    %cst_17 = arith.constant dense<0.000000e+00> : vector<2x8x8xf32>
    %50 = tpu.matmul %45, %47, %cst_17 {dimension_numbers = #tpu.dot_dimension_numbers<[2], [2], [1], [1], [0, 0, 0, 1, 1, 1], [0], [0]>} : vector<2x8x8xbf16>, vector<2x8x8xbf16>, vector<2x8x8xf32> -> vector<2x8x8xf32>
    "tpu.trace_stop"() : () -> ()
    %cst_18 = arith.constant dense<0xFF800000> : vector<2x8xf32>
    %51 = vector.multi_reduction <maximumf>, %50, %cst_18 [2] : vector<2x8x8xf32> to vector<2x8xf32>
    %52 = vector.shape_cast %51 : vector<2x8xf32> to vector<2x8x1xf32>
    %53 = vector.broadcast %52 : vector<2x8x1xf32> to vector<2x8x8xf32>
    %54 = arith.subf %50, %53 : vector<2x8x8xf32>
    %55 = math.exp %54 : vector<2x8x8xf32>
    %cst_19 = arith.constant dense<0.000000e+00> : vector<2x8xf32>
    %56 = vector.multi_reduction <add>, %55, %cst_19 [2] : vector<2x8x8xf32> to vector<2x8xf32>
    %57 = vector.shape_cast %56 : vector<2x8xf32> to vector<2x8x1xf32>
    %58 = tpu.reciprocal %57 {approx = true} : vector<2x8x1xf32> -> vector<2x8x1xf32>
    %59 = vector.broadcast %58 : vector<2x8x1xf32> to vector<2x8x8xf32>
    %60 = arith.mulf %55, %59 : vector<2x8x8xf32>
    %61 = arith.truncf %60 : vector<2x8x8xf32> to vector<2x8x8xbf16>
    "tpu.trace_start"() <{level = 10 : i32, message = "nqk,nkd->nqd"}> : () -> ()
    %cst_20 = arith.constant dense<0.000000e+00> : vector<2x8x8xf32>
    %62 = tpu.matmul %61, %49, %cst_20 {dimension_numbers = #tpu.dot_dimension_numbers<[2], [1], [1], [2], [0, 0, 0, 1, 1, 2], [0], [0]>} : vector<2x8x8xbf16>, vector<2x8x8xbf16>, vector<2x8x8xf32> -> vector<2x8x8xf32>
    "tpu.trace_stop"() : () -> ()
    %63 = arith.truncf %62 : vector<2x8x8xf32> to vector<2x8x8xbf16>
    %64 = vector.shape_cast %63 : vector<2x8x8xbf16> to vector<16x8xbf16>
    %c0_21 = arith.constant 0 : index
    %c0_22 = arith.constant 0 : index
    %c0_23 = arith.constant 0 : index
    %65 = vector.load %arg6[%c0_21, %c0_22, %c0_23] : memref<4x8x32xbf16, #tpu.memory_space<vmem>>, vector<1x8x32xbf16>
    %66 = vector.shape_cast %65 : vector<1x8x32xbf16> to vector<8x32xbf16>
    %cst_24 = arith.constant dense<0.000000e+00> : vector<16x32xf32>
    %67 = tpu.matmul %64, %66, %cst_24 {dimension_numbers = #tpu.dot_dimension_numbers<[1], [0], [0], [1], [0, 0, 1, 1], [], []>} : vector<16x8xbf16>, vector<8x32xbf16>, vector<16x32xf32> -> vector<16x32xf32>
    %68 = arith.addf %38, %67 : vector<16x32xf32>
    %69 = vector.extract_strided_slice %37 {offsets = [0, 8], sizes = [16, 8], strides = [1, 1]} : vector<16x96xf32> to vector<16x8xf32>
    %cst_25 = arith.constant 0.353553385 : f32
    %70 = vector.broadcast %cst_25 : f32 to vector<16x8xf32>
    %71 = arith.mulf %69, %70 : vector<16x8xf32>
    %72 = vector.extract_strided_slice %37 {offsets = [0, 40], sizes = [16, 8], strides = [1, 1]} : vector<16x96xf32> to vector<16x8xf32>
    %73 = vector.extract_strided_slice %37 {offsets = [0, 72], sizes = [16, 8], strides = [1, 1]} : vector<16x96xf32> to vector<16x8xf32>
    %74 = arith.truncf %71 : vector<16x8xf32> to vector<16x8xbf16>
    %75 = vector.shape_cast %74 : vector<16x8xbf16> to vector<2x8x8xbf16>
    %76 = arith.truncf %72 : vector<16x8xf32> to vector<16x8xbf16>
    %77 = vector.shape_cast %76 : vector<16x8xbf16> to vector<2x8x8xbf16>
    %78 = arith.truncf %73 : vector<16x8xf32> to vector<16x8xbf16>
    %79 = vector.shape_cast %78 : vector<16x8xbf16> to vector<2x8x8xbf16>
    "tpu.trace_start"() <{level = 10 : i32, message = "nqd,nkd->nqk"}> : () -> ()
    %cst_26 = arith.constant dense<0.000000e+00> : vector<2x8x8xf32>
    %80 = tpu.matmul %75, %77, %cst_26 {dimension_numbers = #tpu.dot_dimension_numbers<[2], [2], [1], [1], [0, 0, 0, 1, 1, 1], [0], [0]>} : vector<2x8x8xbf16>, vector<2x8x8xbf16>, vector<2x8x8xf32> -> vector<2x8x8xf32>
    "tpu.trace_stop"() : () -> ()
    %cst_27 = arith.constant dense<0xFF800000> : vector<2x8xf32>
    %81 = vector.multi_reduction <maximumf>, %80, %cst_27 [2] : vector<2x8x8xf32> to vector<2x8xf32>
    %82 = vector.shape_cast %81 : vector<2x8xf32> to vector<2x8x1xf32>
    %83 = vector.broadcast %82 : vector<2x8x1xf32> to vector<2x8x8xf32>
    %84 = arith.subf %80, %83 : vector<2x8x8xf32>
    %85 = math.exp %84 : vector<2x8x8xf32>
    %cst_28 = arith.constant dense<0.000000e+00> : vector<2x8xf32>
    %86 = vector.multi_reduction <add>, %85, %cst_28 [2] : vector<2x8x8xf32> to vector<2x8xf32>
    %87 = vector.shape_cast %86 : vector<2x8xf32> to vector<2x8x1xf32>
    %88 = tpu.reciprocal %87 {approx = true} : vector<2x8x1xf32> -> vector<2x8x1xf32>
    %89 = vector.broadcast %88 : vector<2x8x1xf32> to vector<2x8x8xf32>
    %90 = arith.mulf %85, %89 : vector<2x8x8xf32>
    %91 = arith.truncf %90 : vector<2x8x8xf32> to vector<2x8x8xbf16>
    "tpu.trace_start"() <{level = 10 : i32, message = "nqk,nkd->nqd"}> : () -> ()
    %cst_29 = arith.constant dense<0.000000e+00> : vector<2x8x8xf32>
    %92 = tpu.matmul %91, %79, %cst_29 {dimension_numbers = #tpu.dot_dimension_numbers<[2], [1], [1], [2], [0, 0, 0, 1, 1, 2], [0], [0]>} : vector<2x8x8xbf16>, vector<2x8x8xbf16>, vector<2x8x8xf32> -> vector<2x8x8xf32>
    "tpu.trace_stop"() : () -> ()
    %93 = arith.truncf %92 : vector<2x8x8xf32> to vector<2x8x8xbf16>
    %94 = vector.shape_cast %93 : vector<2x8x8xbf16> to vector<16x8xbf16>
    %c1 = arith.constant 1 : index
    %c0_30 = arith.constant 0 : index
    %c0_31 = arith.constant 0 : index
    %95 = vector.load %arg6[%c1, %c0_30, %c0_31] : memref<4x8x32xbf16, #tpu.memory_space<vmem>>, vector<1x8x32xbf16>
    %96 = vector.shape_cast %95 : vector<1x8x32xbf16> to vector<8x32xbf16>
    %cst_32 = arith.constant dense<0.000000e+00> : vector<16x32xf32>
    %97 = tpu.matmul %94, %96, %cst_32 {dimension_numbers = #tpu.dot_dimension_numbers<[1], [0], [0], [1], [0, 0, 1, 1], [], []>} : vector<16x8xbf16>, vector<8x32xbf16>, vector<16x32xf32> -> vector<16x32xf32>
    %98 = arith.addf %68, %97 : vector<16x32xf32>
    %99 = vector.extract_strided_slice %37 {offsets = [0, 16], sizes = [16, 8], strides = [1, 1]} : vector<16x96xf32> to vector<16x8xf32>
    %cst_33 = arith.constant 0.353553385 : f32
    %100 = vector.broadcast %cst_33 : f32 to vector<16x8xf32>
    %101 = arith.mulf %99, %100 : vector<16x8xf32>
    %102 = vector.extract_strided_slice %37 {offsets = [0, 48], sizes = [16, 8], strides = [1, 1]} : vector<16x96xf32> to vector<16x8xf32>
    %103 = vector.extract_strided_slice %37 {offsets = [0, 80], sizes = [16, 8], strides = [1, 1]} : vector<16x96xf32> to vector<16x8xf32>
    %104 = arith.truncf %101 : vector<16x8xf32> to vector<16x8xbf16>
    %105 = vector.shape_cast %104 : vector<16x8xbf16> to vector<2x8x8xbf16>
    %106 = arith.truncf %102 : vector<16x8xf32> to vector<16x8xbf16>
    %107 = vector.shape_cast %106 : vector<16x8xbf16> to vector<2x8x8xbf16>
    %108 = arith.truncf %103 : vector<16x8xf32> to vector<16x8xbf16>
    %109 = vector.shape_cast %108 : vector<16x8xbf16> to vector<2x8x8xbf16>
    "tpu.trace_start"() <{level = 10 : i32, message = "nqd,nkd->nqk"}> : () -> ()
    %cst_34 = arith.constant dense<0.000000e+00> : vector<2x8x8xf32>
    %110 = tpu.matmul %105, %107, %cst_34 {dimension_numbers = #tpu.dot_dimension_numbers<[2], [2], [1], [1], [0, 0, 0, 1, 1, 1], [0], [0]>} : vector<2x8x8xbf16>, vector<2x8x8xbf16>, vector<2x8x8xf32> -> vector<2x8x8xf32>
    "tpu.trace_stop"() : () -> ()
    %cst_35 = arith.constant dense<0xFF800000> : vector<2x8xf32>
    %111 = vector.multi_reduction <maximumf>, %110, %cst_35 [2] : vector<2x8x8xf32> to vector<2x8xf32>
    %112 = vector.shape_cast %111 : vector<2x8xf32> to vector<2x8x1xf32>
    %113 = vector.broadcast %112 : vector<2x8x1xf32> to vector<2x8x8xf32>
    %114 = arith.subf %110, %113 : vector<2x8x8xf32>
    %115 = math.exp %114 : vector<2x8x8xf32>
    %cst_36 = arith.constant dense<0.000000e+00> : vector<2x8xf32>
    %116 = vector.multi_reduction <add>, %115, %cst_36 [2] : vector<2x8x8xf32> to vector<2x8xf32>
    %117 = vector.shape_cast %116 : vector<2x8xf32> to vector<2x8x1xf32>
    %118 = tpu.reciprocal %117 {approx = true} : vector<2x8x1xf32> -> vector<2x8x1xf32>
    %119 = vector.broadcast %118 : vector<2x8x1xf32> to vector<2x8x8xf32>
    %120 = arith.mulf %115, %119 : vector<2x8x8xf32>
    %121 = arith.truncf %120 : vector<2x8x8xf32> to vector<2x8x8xbf16>
    "tpu.trace_start"() <{level = 10 : i32, message = "nqk,nkd->nqd"}> : () -> ()
    %cst_37 = arith.constant dense<0.000000e+00> : vector<2x8x8xf32>
    %122 = tpu.matmul %121, %109, %cst_37 {dimension_numbers = #tpu.dot_dimension_numbers<[2], [1], [1], [2], [0, 0, 0, 1, 1, 2], [0], [0]>} : vector<2x8x8xbf16>, vector<2x8x8xbf16>, vector<2x8x8xf32> -> vector<2x8x8xf32>
    "tpu.trace_stop"() : () -> ()
    %123 = arith.truncf %122 : vector<2x8x8xf32> to vector<2x8x8xbf16>
    %124 = vector.shape_cast %123 : vector<2x8x8xbf16> to vector<16x8xbf16>
    %c2 = arith.constant 2 : index
    %c0_38 = arith.constant 0 : index
    %c0_39 = arith.constant 0 : index
    %125 = vector.load %arg6[%c2, %c0_38, %c0_39] : memref<4x8x32xbf16, #tpu.memory_space<vmem>>, vector<1x8x32xbf16>
    %126 = vector.shape_cast %125 : vector<1x8x32xbf16> to vector<8x32xbf16>
    %cst_40 = arith.constant dense<0.000000e+00> : vector<16x32xf32>
    %127 = tpu.matmul %124, %126, %cst_40 {dimension_numbers = #tpu.dot_dimension_numbers<[1], [0], [0], [1], [0, 0, 1, 1], [], []>} : vector<16x8xbf16>, vector<8x32xbf16>, vector<16x32xf32> -> vector<16x32xf32>
    %128 = arith.addf %98, %127 : vector<16x32xf32>
    %129 = vector.extract_strided_slice %37 {offsets = [0, 24], sizes = [16, 8], strides = [1, 1]} : vector<16x96xf32> to vector<16x8xf32>
    %cst_41 = arith.constant 0.353553385 : f32
    %130 = vector.broadcast %cst_41 : f32 to vector<16x8xf32>
    %131 = arith.mulf %129, %130 : vector<16x8xf32>
    %132 = vector.extract_strided_slice %37 {offsets = [0, 56], sizes = [16, 8], strides = [1, 1]} : vector<16x96xf32> to vector<16x8xf32>
    %133 = vector.extract_strided_slice %37 {offsets = [0, 88], sizes = [16, 8], strides = [1, 1]} : vector<16x96xf32> to vector<16x8xf32>
    %134 = arith.truncf %131 : vector<16x8xf32> to vector<16x8xbf16>
    %135 = vector.shape_cast %134 : vector<16x8xbf16> to vector<2x8x8xbf16>
    %136 = arith.truncf %132 : vector<16x8xf32> to vector<16x8xbf16>
    %137 = vector.shape_cast %136 : vector<16x8xbf16> to vector<2x8x8xbf16>
    %138 = arith.truncf %133 : vector<16x8xf32> to vector<16x8xbf16>
    %139 = vector.shape_cast %138 : vector<16x8xbf16> to vector<2x8x8xbf16>
    "tpu.trace_start"() <{level = 10 : i32, message = "nqd,nkd->nqk"}> : () -> ()
    %cst_42 = arith.constant dense<0.000000e+00> : vector<2x8x8xf32>
    %140 = tpu.matmul %135, %137, %cst_42 {dimension_numbers = #tpu.dot_dimension_numbers<[2], [2], [1], [1], [0, 0, 0, 1, 1, 1], [0], [0]>} : vector<2x8x8xbf16>, vector<2x8x8xbf16>, vector<2x8x8xf32> -> vector<2x8x8xf32>
    "tpu.trace_stop"() : () -> ()
    %cst_43 = arith.constant dense<0xFF800000> : vector<2x8xf32>
    %141 = vector.multi_reduction <maximumf>, %140, %cst_43 [2] : vector<2x8x8xf32> to vector<2x8xf32>
    %142 = vector.shape_cast %141 : vector<2x8xf32> to vector<2x8x1xf32>
    %143 = vector.broadcast %142 : vector<2x8x1xf32> to vector<2x8x8xf32>
    %144 = arith.subf %140, %143 : vector<2x8x8xf32>
    %145 = math.exp %144 : vector<2x8x8xf32>
    %cst_44 = arith.constant dense<0.000000e+00> : vector<2x8xf32>
    %146 = vector.multi_reduction <add>, %145, %cst_44 [2] : vector<2x8x8xf32> to vector<2x8xf32>
    %147 = vector.shape_cast %146 : vector<2x8xf32> to vector<2x8x1xf32>
    %148 = tpu.reciprocal %147 {approx = true} : vector<2x8x1xf32> -> vector<2x8x1xf32>
    %149 = vector.broadcast %148 : vector<2x8x1xf32> to vector<2x8x8xf32>
    %150 = arith.mulf %145, %149 : vector<2x8x8xf32>
    %151 = arith.truncf %150 : vector<2x8x8xf32> to vector<2x8x8xbf16>
    "tpu.trace_start"() <{level = 10 : i32, message = "nqk,nkd->nqd"}> : () -> ()
    %cst_45 = arith.constant dense<0.000000e+00> : vector<2x8x8xf32>
    %152 = tpu.matmul %151, %139, %cst_45 {dimension_numbers = #tpu.dot_dimension_numbers<[2], [1], [1], [2], [0, 0, 0, 1, 1, 2], [0], [0]>} : vector<2x8x8xbf16>, vector<2x8x8xbf16>, vector<2x8x8xf32> -> vector<2x8x8xf32>
    "tpu.trace_stop"() : () -> ()
    %153 = arith.truncf %152 : vector<2x8x8xf32> to vector<2x8x8xbf16>
    %154 = vector.shape_cast %153 : vector<2x8x8xbf16> to vector<16x8xbf16>
    %c3 = arith.constant 3 : index
    %c0_46 = arith.constant 0 : index
    %c0_47 = arith.constant 0 : index
    %155 = vector.load %arg6[%c3, %c0_46, %c0_47] : memref<4x8x32xbf16, #tpu.memory_space<vmem>>, vector<1x8x32xbf16>
    %156 = vector.shape_cast %155 : vector<1x8x32xbf16> to vector<8x32xbf16>
    %cst_48 = arith.constant dense<0.000000e+00> : vector<16x32xf32>
    %157 = tpu.matmul %154, %156, %cst_48 {dimension_numbers = #tpu.dot_dimension_numbers<[1], [0], [0], [1], [0, 0, 1, 1], [], []>} : vector<16x8xbf16>, vector<8x32xbf16>, vector<16x32xf32> -> vector<16x32xf32>
    %158 = arith.addf %128, %157 : vector<16x32xf32>
    %c0_49 = arith.constant 0 : index
    %c0_50 = arith.constant 0 : index
    %159 = vector.load %arg7[%c0_49, %c0_50] : memref<1x32xf32, #tpu.memory_space<vmem>>, vector<1x32xf32>
    %160 = vector.shape_cast %159 : vector<1x32xf32> to vector<32xf32>
    %161 = vector.shape_cast %160 : vector<32xf32> to vector<1x32xf32>
    %162 = vector.broadcast %161 : vector<1x32xf32> to vector<16x32xf32>
    %163 = arith.addf %158, %162 : vector<16x32xf32>
    %164 = vector.shape_cast %163 : vector<16x32xf32> to vector<2x8x32xf32>
    %165 = arith.addf %0, %164 : vector<2x8x32xf32>
    %c0_51 = arith.constant 0 : index
    %c0_52 = arith.constant 0 : index
    %166 = vector.load %arg8[%c0_51, %c0_52] : memref<1x32xf32, #tpu.memory_space<vmem>>, vector<1x32xf32>
    %167 = vector.shape_cast %166 : vector<1x32xf32> to vector<32xf32>
    %c0_53 = arith.constant 0 : index
    %c0_54 = arith.constant 0 : index
    %168 = vector.load %arg9[%c0_53, %c0_54] : memref<1x32xf32, #tpu.memory_space<vmem>>, vector<1x32xf32>
    %169 = vector.shape_cast %168 : vector<1x32xf32> to vector<32xf32>
    %cst_55 = arith.constant dense<0.000000e+00> : vector<2x8xf32>
    %170 = vector.multi_reduction <add>, %165, %cst_55 [2] : vector<2x8x32xf32> to vector<2x8xf32>
    %171 = vector.shape_cast %170 : vector<2x8xf32> to vector<2x8x1xf32>
    %cst_56 = arith.constant 3.200000e+01 : f32
    %172 = vector.broadcast %cst_56 : f32 to vector<2x8x1xf32>
    %173 = arith.divf %171, %172 : vector<2x8x1xf32>
    %174 = vector.broadcast %173 : vector<2x8x1xf32> to vector<2x8x32xf32>
    %175 = arith.subf %165, %174 : vector<2x8x32xf32>
    %176 = arith.mulf %175, %175 : vector<2x8x32xf32>
    %cst_57 = arith.constant dense<0.000000e+00> : vector<2x8xf32>
    %177 = vector.multi_reduction <add>, %176, %cst_57 [2] : vector<2x8x32xf32> to vector<2x8xf32>
    %178 = vector.shape_cast %177 : vector<2x8xf32> to vector<2x8x1xf32>
    %cst_58 = arith.constant 3.200000e+01 : f32
    %179 = vector.broadcast %cst_58 : f32 to vector<2x8x1xf32>
    %180 = arith.divf %178, %179 : vector<2x8x1xf32>
    %181 = vector.broadcast %173 : vector<2x8x1xf32> to vector<2x8x32xf32>
    %182 = arith.subf %165, %181 : vector<2x8x32xf32>
    %cst_59 = arith.constant 9.99999974E-6 : f32
    %183 = vector.broadcast %cst_59 : f32 to vector<2x8x1xf32>
    %184 = arith.addf %180, %183 : vector<2x8x1xf32>
    %185 = math.rsqrt %184 : vector<2x8x1xf32>
    %186 = vector.broadcast %185 : vector<2x8x1xf32> to vector<2x8x32xf32>
    %187 = arith.mulf %182, %186 : vector<2x8x32xf32>
    %188 = vector.shape_cast %167 : vector<32xf32> to vector<1x1x32xf32>
    %189 = vector.broadcast %188 : vector<1x1x32xf32> to vector<2x8x32xf32>
    %190 = arith.mulf %187, %189 : vector<2x8x32xf32>
    %191 = vector.shape_cast %169 : vector<32xf32> to vector<1x1x32xf32>
    %192 = vector.broadcast %191 : vector<1x1x32xf32> to vector<2x8x32xf32>
    %193 = arith.addf %190, %192 : vector<2x8x32xf32>
    %194 = arith.truncf %193 : vector<2x8x32xf32> to vector<2x8x32xbf16>
    %195 = vector.shape_cast %194 : vector<2x8x32xbf16> to vector<16x32xbf16>
    %c0_60 = arith.constant 0 : index
    %c0_61 = arith.constant 0 : index
    %196 = vector.load %arg10[%c0_60, %c0_61] : memref<32x128xbf16, #tpu.memory_space<vmem>>, vector<32x128xbf16>
    %cst_62 = arith.constant dense<0.000000e+00> : vector<16x128xf32>
    %197 = tpu.matmul %195, %196, %cst_62 {dimension_numbers = #tpu.dot_dimension_numbers<[1], [0], [0], [1], [0, 0, 1, 1], [], []>} : vector<16x32xbf16>, vector<32x128xbf16>, vector<16x128xf32> -> vector<16x128xf32>
    %c0_63 = arith.constant 0 : index
    %c0_64 = arith.constant 0 : index
    %198 = vector.load %arg11[%c0_63, %c0_64] : memref<1x128xf32, #tpu.memory_space<vmem>>, vector<1x128xf32>
    %199 = vector.shape_cast %198 : vector<1x128xf32> to vector<128xf32>
    %200 = vector.shape_cast %199 : vector<128xf32> to vector<1x128xf32>
    %201 = vector.broadcast %200 : vector<1x128xf32> to vector<16x128xf32>
    %202 = arith.addf %197, %201 : vector<16x128xf32>
    %cst_65 = arith.constant 1.702000e+00 : f32
    %203 = vector.broadcast %cst_65 : f32 to vector<16x128xf32>
    %204 = arith.mulf %203, %202 : vector<16x128xf32>
    %205 = arith.negf %204 : vector<16x128xf32>
    %206 = math.exp %205 : vector<16x128xf32>
    %cst_66 = arith.constant 1.000000e+00 : f32
    %207 = vector.broadcast %cst_66 : f32 to vector<16x128xf32>
    %208 = arith.addf %207, %206 : vector<16x128xf32>
    %209 = arith.divf %207, %208 : vector<16x128xf32>
    %210 = arith.mulf %202, %209 : vector<16x128xf32>
    %211 = arith.truncf %210 : vector<16x128xf32> to vector<16x128xbf16>
    %c0_67 = arith.constant 0 : index
    %c0_68 = arith.constant 0 : index
    %212 = vector.load %arg12[%c0_67, %c0_68] : memref<128x32xbf16, #tpu.memory_space<vmem>>, vector<128x32xbf16>
    %cst_69 = arith.constant dense<0.000000e+00> : vector<16x32xf32>
    %213 = tpu.matmul %211, %212, %cst_69 {dimension_numbers = #tpu.dot_dimension_numbers<[1], [0], [0], [1], [0, 0, 1, 1], [], []>} : vector<16x128xbf16>, vector<128x32xbf16>, vector<16x32xf32> -> vector<16x32xf32>
    %c0_70 = arith.constant 0 : index
    %c0_71 = arith.constant 0 : index
    %214 = vector.load %arg13[%c0_70, %c0_71] : memref<1x32xf32, #tpu.memory_space<vmem>>, vector<1x32xf32>
    %215 = vector.shape_cast %214 : vector<1x32xf32> to vector<32xf32>
    %216 = vector.shape_cast %215 : vector<32xf32> to vector<1x32xf32>
    %217 = vector.broadcast %216 : vector<1x32xf32> to vector<16x32xf32>
    %218 = arith.addf %213, %217 : vector<16x32xf32>
    %219 = vector.shape_cast %218 : vector<16x32xf32> to vector<2x8x32xf32>
    %220 = arith.addf %165, %219 : vector<2x8x32xf32>
    %c0_72 = arith.constant 0 : index
    %c0_73 = arith.constant 0 : index
    %c0_74 = arith.constant 0 : index
    %221 = vector.load %arg14[%c0_72, %c0_73, %c0_74] : memref<2x8x32xf32, #tpu.memory_space<vmem>>, vector<2x8x32xf32>
    tpu.vector_store %arg14[%c0_72, %c0_73, %c0_74], %220 {strides = array<i32>} : memref<2x8x32xf32, #tpu.memory_space<vmem>>, vector<2x8x32xf32>,
    return
  }
  func.func @transform_0(%arg0: i32) -> (i32, i32, i32) {
    %c0_i32 = arith.constant 0 : i32
    %c0_i32_0 = arith.constant 0 : i32
    %c0_i32_1 = arith.constant 0 : i32
    return %arg0, %c0_i32, %c0_i32_0 : i32, i32, i32
  }
  func.func @transform_1(%arg0: i32) -> (i32, i32) {
    %c0_i32 = arith.constant 0 : i32
    %c0_i32_0 = arith.constant 0 : i32
    %c0_i32_1 = arith.constant 0 : i32
    return %c0_i32, %c0_i32_0 : i32, i32
  }
  func.func @transform_2(%arg0: i32) -> (i32, i32) {
    %c0_i32 = arith.constant 0 : i32
    %c0_i32_0 = arith.constant 0 : i32
    %c0_i32_1 = arith.constant 0 : i32
    return %c0_i32, %c0_i32_0 : i32, i32
  }
  func.func @transform_3(%arg0: i32) -> (i32, i32) {
    %c0_i32 = arith.constant 0 : i32
    %c0_i32_0 = arith.constant 0 : i32
    %c0_i32_1 = arith.constant 0 : i32
    return %c0_i32, %c0_i32_0 : i32, i32
  }
  func.func @transform_4(%arg0: i32) -> (i32, i32) {
    %c0_i32 = arith.constant 0 : i32
    %c0_i32_0 = arith.constant 0 : i32
    %c0_i32_1 = arith.constant 0 : i32
    return %c0_i32, %c0_i32_0 : i32, i32
  }
  func.func @transform_5(%arg0: i32) -> (i32, i32, i32) {
    %c0_i32 = arith.constant 0 : i32
    %c0_i32_0 = arith.constant 0 : i32
    %c0_i32_1 = arith.constant 0 : i32
    %c0_i32_2 = arith.constant 0 : i32
    return %c0_i32, %c0_i32_0, %c0_i32_1 : i32, i32, i32
  }
  func.func @transform_6(%arg0: i32) -> (i32, i32) {
    %c0_i32 = arith.constant 0 : i32
    %c0_i32_0 = arith.constant 0 : i32
    %c0_i32_1 = arith.constant 0 : i32
    return %c0_i32, %c0_i32_0 : i32, i32
  }
  func.func @transform_7(%arg0: i32) -> (i32, i32) {
    %c0_i32 = arith.constant 0 : i32
    %c0_i32_0 = arith.constant 0 : i32
    %c0_i32_1 = arith.constant 0 : i32
    return %c0_i32, %c0_i32_0 : i32, i32
  }
  func.func @transform_8(%arg0: i32) -> (i32, i32) {
    %c0_i32 = arith.constant 0 : i32
    %c0_i32_0 = arith.constant 0 : i32
    %c0_i32_1 = arith.constant 0 : i32
    return %c0_i32, %c0_i32_0 : i32, i32
  }
  func.func @transform_9(%arg0: i32) -> (i32, i32) {
    %c0_i32 = arith.constant 0 : i32
    %c0_i32_0 = arith.constant 0 : i32
    %c0_i32_1 = arith.constant 0 : i32
    return %c0_i32, %c0_i32_0 : i32, i32
  }
  func.func @transform_10(%arg0: i32) -> (i32, i32) {
    %c0_i32 = arith.constant 0 : i32
    %c0_i32_0 = arith.constant 0 : i32
    %c0_i32_1 = arith.constant 0 : i32
    return %c0_i32, %c0_i32_0 : i32, i32
  }
  func.func @transform_11(%arg0: i32) -> (i32, i32) {
    %c0_i32 = arith.constant 0 : i32
    %c0_i32_0 = arith.constant 0 : i32
    %c0_i32_1 = arith.constant 0 : i32
    return %c0_i32, %c0_i32_0 : i32, i32
  }
  func.func @transform_12(%arg0: i32) -> (i32, i32) {
    %c0_i32 = arith.constant 0 : i32
    %c0_i32_0 = arith.constant 0 : i32
    %c0_i32_1 = arith.constant 0 : i32
    return %c0_i32, %c0_i32_0 : i32, i32
  }
  func.func @transform_13(%arg0: i32) -> (i32, i32, i32) {
    %c0_i32 = arith.constant 0 : i32
    %c0_i32_0 = arith.constant 0 : i32
    %c0_i32_1 = arith.constant 0 : i32
    return %arg0, %c0_i32, %c0_i32_0 : i32, i32, i32
  }
}

</mosaic_0001>

<llo_original>
// kernel: transformer_forward.2
$region0: #{transformer_forward.2}
  #allocation0 [shape = 'u32[]', space=smem, size = 0x4, offset = 0x4, fixed_abs, tag = 'smem constant byte address 0x4 - core index']
  #allocation1 [shape = 'u32[144,128]{1,0:T(1,128)}', space=vmem, size = 0x12000, scoped, tag = 'internal scratch']
  %s0 = inlined_call_operand.vmem [shape: f32[2,8,32], index: 0, kind: input, shape index: {}]
  %s1 = inlined_call_operand.vmem [shape: f32[1,32], index: 1, kind: input, shape index: {}]
  %s2 = inlined_call_operand.vmem [shape: f32[1,32], index: 2, kind: input, shape index: {}]
  %s3 = inlined_call_operand.vmem [shape: bf16[32,96], index: 3, kind: input, shape index: {}]
  %s4 = inlined_call_operand.vmem [shape: f32[1,96], index: 4, kind: input, shape index: {}]
  %s5 = inlined_call_operand.vmem [shape: bf16[4,8,32], index: 5, kind: input, shape index: {}]
  %s6 = inlined_call_operand.vmem [shape: f32[1,32], index: 6, kind: input, shape index: {}]
  %s7 = inlined_call_operand.vmem [shape: f32[1,32], index: 7, kind: input, shape index: {}]
  %s8 = inlined_call_operand.vmem [shape: f32[1,32], index: 8, kind: input, shape index: {}]
  %s9 = inlined_call_operand.vmem [shape: bf16[32,128], index: 9, kind: input, shape index: {}]
  %s10 = inlined_call_operand.vmem [shape: f32[1,128], index: 10, kind: input, shape index: {}]
  %s11 = inlined_call_operand.vmem [shape: bf16[128,32], index: 11, kind: input, shape index: {}]
  %s12 = inlined_call_operand.vmem [shape: f32[1,32], index: 12, kind: input, shape index: {}]
  %s13 = inlined_call_operand.vmem [shape: f32[2,8,32], index: 13, kind: output, shape index: {}]
  %s14 = sld [smem:[#allocation0]]
  $region62: #{transformer_forward.2} parent=0
    _
  %s16 = ssub.s32 1, %s14
  %s17 = scalar_select 0, %s16, %s14
  // Predicated region
  $region2: #{transformer_forward.2} parent=0 // pred_check
    _
  $region3: #{transformer_forward.2} parent=0 // pred_check_branch
    %19 = sbr.rel (0) target = $region5
  $region4: #{transformer_forward.2} parent=0 // pred_region
    _
  $region5: #{transformer_forward.2} parent=0 // pred_fallthru
    _
  // Predicated region
  $region6: #{transformer_forward.2} parent=0 // pred_check
    _
  $region7: #{transformer_forward.2} parent=0 // pred_check_branch
    %21 = sbr.rel (0) target = $region9
  $region8: #{transformer_forward.2} parent=0 // pred_region
    _
  $region9: #{transformer_forward.2} parent=0 // pred_fallthru
    _
  // Predicated region
  $region10: #{transformer_forward.2} parent=0 // pred_check
    _
  $region11: #{transformer_forward.2} parent=0 // pred_check_branch
    %23 = sbr.rel (0) target = $region13
  $region12: #{transformer_forward.2} parent=0 // pred_region
    _
  $region13: #{transformer_forward.2} parent=0 // pred_fallthru
    _
  // Predicated region
  $region14: #{transformer_forward.2} parent=0 // pred_check
    _
  $region15: #{transformer_forward.2} parent=0 // pred_check_branch
    %25 = sbr.rel (0) target = $region17
  $region16: #{transformer_forward.2} parent=0 // pred_region
    _
  $region17: #{transformer_forward.2} parent=0 // pred_fallthru
    _
  // Predicated region
  $region18: #{transformer_forward.2} parent=0 // pred_check
    _
  $region19: #{transformer_forward.2} parent=0 // pred_check_branch
    %27 = sbr.rel (0) target = $region21
  $region20: #{transformer_forward.2} parent=0 // pred_region
    _
  $region21: #{transformer_forward.2} parent=0 // pred_fallthru
    _
  // Predicated region
  $region22: #{transformer_forward.2} parent=0 // pred_check
    _
  $region23: #{transformer_forward.2} parent=0 // pred_check_branch
    %29 = sbr.rel (0) target = $region25
  $region24: #{transformer_forward.2} parent=0 // pred_region
    _
  $region25: #{transformer_forward.2} parent=0 // pred_fallthru
    _
  // Predicated region
  $region26: #{transformer_forward.2} parent=0 // pred_check
    _
  $region27: #{transformer_forward.2} parent=0 // pred_check_branch
    %31 = sbr.rel (0) target = $region29
  $region28: #{transformer_forward.2} parent=0 // pred_region
    _
  $region29: #{transformer_forward.2} parent=0 // pred_fallthru
    _
  // Predicated region
  $region30: #{transformer_forward.2} parent=0 // pred_check
    _
  $region31: #{transformer_forward.2} parent=0 // pred_check_branch
    %33 = sbr.rel (0) target = $region33
  $region32: #{transformer_forward.2} parent=0 // pred_region
    _
  $region33: #{transformer_forward.2} parent=0 // pred_fallthru
    _
  // Predicated region
  $region34: #{transformer_forward.2} parent=0 // pred_check
    _
  $region35: #{transformer_forward.2} parent=0 // pred_check_branch
    %35 = sbr.rel (0) target = $region37
  $region36: #{transformer_forward.2} parent=0 // pred_region
    _
  $region37: #{transformer_forward.2} parent=0 // pred_fallthru
    _
  // Predicated region
  $region38: #{transformer_forward.2} parent=0 // pred_check
    _
  $region39: #{transformer_forward.2} parent=0 // pred_check_branch
    %37 = sbr.rel (0) target = $region41
  $region40: #{transformer_forward.2} parent=0 // pred_region
    _
  $region41: #{transformer_forward.2} parent=0 // pred_fallthru
    _
  // Predicated region
  $region42: #{transformer_forward.2} parent=0 // pred_check
    _
  $region43: #{transformer_forward.2} parent=0 // pred_check_branch
    %39 = sbr.rel (0) target = $region45
  $region44: #{transformer_forward.2} parent=0 // pred_region
    _
  $region45: #{transformer_forward.2} parent=0 // pred_fallthru
    _
  // Predicated region
  $region46: #{transformer_forward.2} parent=0 // pred_check
    _
  $region47: #{transformer_forward.2} parent=0 // pred_check_branch
    %41 = sbr.rel (0) target = $region49
  $region48: #{transformer_forward.2} parent=0 // pred_region
    _
  $region49: #{transformer_forward.2} parent=0 // pred_fallthru
    _
  // Predicated region
  $region50: #{transformer_forward.2} parent=0 // pred_check
    _
  $region51: #{transformer_forward.2} parent=0 // pred_check_branch
    %43 = sbr.rel (0) target = $region53
  $region52: #{transformer_forward.2} parent=0 // pred_region
    _
  $region53: #{transformer_forward.2} parent=0 // pred_fallthru
    _
  %v45 = vld [vmem:[%s0] sm:$0xff]
  %v46 = vld [vmem:[%s0 + $0x8] sm:$0xff]
  %v47 = vld [vmem:[%s1] sm:$0x1]
  %v48 = vld [vmem:[%s2] sm:$0x1]
  %vm49 = vcmask 261120
  %v50 = vsel %vm49, %v45, 0.0
  %51 = vadd.xlane.f32.xlu0 %v50
  %v52 = vpop.xlane.xlu0 %51
  %v53 = vsel %vm49, %v46, 0.0
  %54 = vadd.xlane.f32.xlu0 %v53
  %v55 = vpop.xlane.xlu0 %54
  %v56 = vrcp.pop 32.0
  %v57 = vmul.f32 %v52, %v56
  %v58 = vmul.f32 %v55, %v56
  %v59 = vsub.f32 %v45, %v57
  %v60 = vsub.f32 %v46, %v58
  %v61 = vmul.f32 %v59, %v59
  %v62 = vmul.f32 %v60, %v60
  %v63 = vsel %vm49, %v61, 0.0
  %64 = vadd.xlane.f32.xlu0 %v63
  %v65 = vpop.xlane.xlu0 %64
  %v66 = vsel %vm49, %v62, 0.0
  %67 = vadd.xlane.f32.xlu0 %v66
  %v68 = vpop.xlane.xlu0 %67
  %v69 = vmul.f32 %v65, %v56
  %v70 = vmul.f32 %v68, %v56
  %v71 = vadd.f32 %v69, 1e-05
  %v72 = vadd.f32 %v70, 1e-05
  %v73 = vrsqrt.pop %v71
  %v74 = vrsqrt.pop %v72
  %v75 = vmul.f32 %v59, %v73
  %v76 = vmul.f32 %v60, %v74
  %v78 = vlaneseq
  %v79 = vshrl.u32 %v78, 7
  %v80 = vsub.s32 0, %v79
  %v81 = vrot.slane %v47, %v80
  %v83 = vmul.f32 %v75, %v81
  %v84 = vmul.f32 %v76, %v81
  %v86 = vlaneseq
  %v87 = vshrl.u32 %v86, 7
  %v88 = vsub.s32 0, %v87
  %v89 = vrot.slane %v48, %v88
  %v91 = vadd.f32 %v83, %v89
  %v92 = vadd.f32 %v84, %v89
  %v93 = vpack.c.bf16 %v91, %v91
  %v94 = vpack.c.bf16 %v92, %v92
  %v95 = vld [vmem:[%s4] sm:$0x1]
  %v96 = vld [vmem:[%s3] sm:$0xf]
  %v97 = vld [vmem:[%s3 + $0x4] sm:$0xf]
  %v98 = vld [vmem:[%s3 + $0x8] sm:$0xf]
  %v99 = vld [vmem:[%s3 + $0xc] sm:$0xf]
  %v101 = vlaneseq
  %v102 = vshrl.u32 %v101, 7
  %v103 = vsub.s32 0, %v102
  %v104 = vrot.slane %v95, %v103
  %v108 = vunpack.c.l.b16 %v93
  %v109 = vunpack.c.l.b16 %v94
  %v110 = vpack.c.b16 %v109, %v108
  %v115 = vunpack.c.l.b16 %v96
  %v116 = vunpack.c.l.b16 %v97
  %v117 = vunpack.c.l.b16 %v98
  %v118 = vunpack.c.l.b16 %v99
  %v119 = vpack.c.b16 %v116, %v115
  %v120 = vpack.c.b16 %v118, %v117
  %v124 = vsel %vm49, %v110, 0
  %126 = vmatprep.subr.bf16.mxu0 0
  %127 = vmatpush1.bf16.msra.mxu0 0
  %128 = vmatprep.subr.bf16.mxu0 0
  %129 = vmatpush1.bf16.msra.mxu0 0
  %130 = vmatprep.subr.bf16.mxu0 0
  %131 = vmatpush1.bf16.msra.mxu0 0
  %132 = vmatprep.subr.bf16.mxu0 0
  %133 = vmatpush1.bf16.msra.mxu0 0
  %134 = vmatprep.subr.bf16.mxu0 0
  %135 = vmatpush1.bf16.msra.mxu0 0
  %136 = vmatprep.subr.bf16.mxu0 0
  %137 = vmatpush1.bf16.msra.mxu0 0
  %138 = vmatprep.subr.bf16.mxu0 0
  %139 = vmatpush1.bf16.msra.mxu0 %v120
  %140 = vmatprep.subr.bf16.mxu0 0
  %141 = vmatpush1.bf16.msra.mxu0 %v119
  %142 = vmatprep.subr.bf16.mxu0 0
  %143 = vmatpush2.bf16.msra.mxu0 0
  %144 = vmatprep.subr.bf16.mxu0 0
  %145 = vmatpush2.bf16.msra.mxu0 0
  %146 = vmatprep.subr.bf16.mxu0 0
  %147 = vmatpush2.bf16.msra.mxu0 0
  %148 = vmatprep.subr.bf16.mxu0 0
  %149 = vmatpush2.bf16.msra.mxu0 0
  %150 = vmatprep.subr.bf16.mxu0 0
  %151 = vmatpush2.bf16.msra.mxu0 0
  %152 = vmatprep.subr.bf16.mxu0 0
  %153 = vmatpush2.bf16.msra.mxu0 0
  %154 = vmatprep.subr.bf16.mxu0 0
  %155 = vmatpush2.bf16.msra.mxu0 0
  %156 = vmatprep.subr.bf16.mxu0 0
  %157 = vmatpush2.bf16.msra.mxu0 0
  %158 = vmatprep.mubr.bf16.mxu0 0
  %159 = vmatmul.mubr.bf16.gmra.mxu0 %v124
  %v160 = vpop.f32.mrf.mxu0
  %v161 = vadd.f32 %v104, %v160
  %v162 = vpop.f32.mrf.mxu0
  %v163 = vpop.f32.mrf.mxu0
  %v164 = vadd.f32 %v104, %v163
  %v165 = vpop.f32.mrf.mxu0
  %166 = vdwg.mxu0
  %v167 = vmul.f32 %v161, 0.35355338
  %v168 = vmul.f32 %v164, 0.35355338
  %v169 = vpack.c.bf16 %v168, %v167
  %v171 = vunpack.c.l.b16 %v169
  %v172 = vunpack.c.h.b16 %v169
  %v173 = vpack.c.b16 %v171, %v171
  %v174 = vpack.c.b16 %v172, %v172
  %v175 = vpack.c.bf16 %v164, %v161
  %v177 = vunpack.c.l.b16 %v175
  %v178 = vunpack.c.h.b16 %v175
  %v179 = vpack.c.b16 %v177, %v177
  %180 = vrot.lane.b32.xlu0 %v179, 96
  %v181 = vpop.permute.xlu0 %180
  %vm182 = vcmask 64512
  %v184 = vsel %vm182, %v173, 0
  %v187 = vsel %vm182, %v181, 0
  %189 = vmatprep.subr.bf16.mxu0 0
  %190 = vmatpush1.bf16.xpose.msra.mxu0 0
  %191 = vmatprep.subr.bf16.mxu0 0
  %192 = vmatpush1.bf16.xpose.msra.mxu0 0
  %193 = vmatprep.subr.bf16.mxu0 0
  %194 = vmatpush1.bf16.xpose.msra.mxu0 0
  %195 = vmatprep.subr.bf16.mxu0 0
  %196 = vmatpush1.bf16.xpose.msra.mxu0 0
  %197 = vmatprep.subr.bf16.mxu0 0
  %198 = vmatpush1.bf16.xpose.msra.mxu0 0
  %199 = vmatprep.subr.bf16.mxu0 0
  %200 = vmatpush1.bf16.xpose.msra.mxu0 0
  %201 = vmatprep.subr.bf16.mxu0 0
  %202 = vmatpush1.bf16.xpose.msra.mxu0 0
  %203 = vmatprep.subr.bf16.mxu0 0
  %204 = vmatpush1.bf16.xpose.msra.mxu0 %v187
  %205 = vmatprep.subr.bf16.mxu0 0
  %206 = vmatpush2.bf16.xpose.msra.mxu0 0
  %207 = vmatprep.subr.bf16.mxu0 0
  %208 = vmatpush2.bf16.xpose.msra.mxu0 0
  %209 = vmatprep.subr.bf16.mxu0 0
  %210 = vmatpush2.bf16.xpose.msra.mxu0 0
  %211 = vmatprep.subr.bf16.mxu0 0
  %212 = vmatpush2.bf16.xpose.msra.mxu0 0
  %213 = vmatprep.subr.bf16.mxu0 0
  %214 = vmatpush2.bf16.xpose.msra.mxu0 0
  %215 = vmatprep.subr.bf16.mxu0 0
  %216 = vmatpush2.bf16.xpose.msra.mxu0 0
  %217 = vmatprep.subr.bf16.mxu0 0
  %218 = vmatpush2.bf16.xpose.msra.mxu0 0
  %219 = vmatprep.subr.bf16.mxu0 0
  %220 = vmatpush2.bf16.xpose.msra.mxu0 0
  %221 = vmatprep.mubr.bf16.mxu0 0
  %222 = vmatmul.mubr.bf16.gmra.mxu0 %v184
  %v223 = vpop.f32.mrf.mxu0
  %v224 = vadd.f32 0.0, %v223
  %v225 = vpop.f32.mrf.mxu0
  %v226 = vpop.f32.mrf.mxu0
  %v227 = vpop.f32.mrf.mxu0
  %228 = vdwg.mxu0
  %v229 = vpack.c.b16 %v178, %v178
  %230 = vrot.lane.b32.xlu0 %v229, 96
  %v231 = vpop.permute.xlu0 %230
  %v233 = vsel %vm182, %v174, 0
  %v236 = vsel %vm182, %v231, 0
  %238 = vmatprep.subr.bf16.mxu0 0
  %239 = vmatpush1.bf16.xpose.msra.mxu0 0
  %240 = vmatprep.subr.bf16.mxu0 0
  %241 = vmatpush1.bf16.xpose.msra.mxu0 0
  %242 = vmatprep.subr.bf16.mxu0 0
  %243 = vmatpush1.bf16.xpose.msra.mxu0 0
  %244 = vmatprep.subr.bf16.mxu0 0
  %245 = vmatpush1.bf16.xpose.msra.mxu0 0
  %246 = vmatprep.subr.bf16.mxu0 0
  %247 = vmatpush1.bf16.xpose.msra.mxu0 0
  %248 = vmatprep.subr.bf16.mxu0 0
  %249 = vmatpush1.bf16.xpose.msra.mxu0 0
  %250 = vmatprep.subr.bf16.mxu0 0
  %251 = vmatpush1.bf16.xpose.msra.mxu0 0
  %252 = vmatprep.subr.bf16.mxu0 0
  %253 = vmatpush1.bf16.xpose.msra.mxu0 %v236
  %254 = vmatprep.subr.bf16.mxu0 0
  %255 = vmatpush2.bf16.xpose.msra.mxu0 0
  %256 = vmatprep.subr.bf16.mxu0 0
  %257 = vmatpush2.bf16.xpose.msra.mxu0 0
  %258 = vmatprep.subr.bf16.mxu0 0
  %259 = vmatpush2.bf16.xpose.msra.mxu0 0
  %260 = vmatprep.subr.bf16.mxu0 0
  %261 = vmatpush2.bf16.xpose.msra.mxu0 0
  %262 = vmatprep.subr.bf16.mxu0 0
  %263 = vmatpush2.bf16.xpose.msra.mxu0 0
  %264 = vmatprep.subr.bf16.mxu0 0
  %265 = vmatpush2.bf16.xpose.msra.mxu0 0
  %266 = vmatprep.subr.bf16.mxu0 0
  %267 = vmatpush2.bf16.xpose.msra.mxu0 0
  %268 = vmatprep.subr.bf16.mxu0 0
  %269 = vmatpush2.bf16.xpose.msra.mxu0 0
  %270 = vmatprep.mubr.bf16.mxu0 0
  %271 = vmatmul.mubr.bf16.gmra.mxu0 %v233
  %v272 = vpop.f32.mrf.mxu0
  %v273 = vadd.f32 0.0, %v272
  %v274 = vpop.f32.mrf.mxu0
  %v275 = vpop.f32.mrf.mxu0
  %v276 = vpop.f32.mrf.mxu0
  %277 = vdwg.mxu0
  %v278 = vsel %vm182, %v224, -inf
  %279 = vmax.xlane.f32.xlu0 %v278
  %v280 = vpop.xlane.xlu0 %279
  %v281 = vsel %vm182, %v273, -inf
  %282 = vmax.xlane.f32.xlu0 %v281
  %v283 = vpop.xlane.xlu0 %282
  %v284 = vsub.f32 %v224, %v280
  %v285 = vsub.f32 %v273, %v283
  %v286 = vmul.f32 %v284, 1.442695
  %v287 = vpow.pop %v286
  %v288 = vmul.f32 %v285, 1.442695
  %v289 = vpow.pop %v288
  %v290 = vsel %vm182, %v287, 0.0
  %291 = vadd.xlane.f32.xlu0 %v290
  %v292 = vpop.xlane.xlu0 %291
  %v293 = vsel %vm182, %v289, 0.0
  %294 = vadd.xlane.f32.xlu0 %v293
  %v295 = vpop.xlane.xlu0 %294
  %v296 = vrcp.pop %v292
  %v297 = vrcp.pop %v295
  %v298 = vmul.f32 %v287, %v296
  %v299 = vmul.f32 %v289, %v297
  %v300 = vpack.c.bf16 %v298, %v298
  %v301 = vpack.c.bf16 %v299, %v299
  %302 = vrot.lane.b32.xlu0 %v179, 64
  %v303 = vpop.permute.xlu0 %302
  %v305 = vsel %vm182, %v300, 0
  %vm307 = vcmask 1043456
  %v309 = vsel %vm307, %v303, 0
  %311 = vmatprep.subr.bf16.mxu0 0
  %312 = vmatpush1.bf16.msra.mxu0 0
  %313 = vmatprep.subr.bf16.mxu0 0
  %314 = vmatpush1.bf16.msra.mxu0 0
  %315 = vmatprep.subr.bf16.mxu0 0
  %316 = vmatpush1.bf16.msra.mxu0 0
  %317 = vmatprep.subr.bf16.mxu0 0
  %318 = vmatpush1.bf16.msra.mxu0 0
  %319 = vmatprep.subr.bf16.mxu0 0
  %320 = vmatpush1.bf16.msra.mxu0 0
  %321 = vmatprep.subr.bf16.mxu0 0
  %322 = vmatpush1.bf16.msra.mxu0 0
  %323 = vmatprep.subr.bf16.mxu0 0
  %324 = vmatpush1.bf16.msra.mxu0 0
  %325 = vmatprep.subr.bf16.mxu0 0
  %326 = vmatpush1.bf16.msra.mxu0 %v309
  %327 = vmatprep.subr.bf16.mxu0 0
  %328 = vmatpush2.bf16.msra.mxu0 0
  %329 = vmatprep.subr.bf16.mxu0 0
  %330 = vmatpush2.bf16.msra.mxu0 0
  %331 = vmatprep.subr.bf16.mxu0 0
  %332 = vmatpush2.bf16.msra.mxu0 0
  %333 = vmatprep.subr.bf16.mxu0 0
  %334 = vmatpush2.bf16.msra.mxu0 0
  %335 = vmatprep.subr.bf16.mxu0 0
  %336 = vmatpush2.bf16.msra.mxu0 0
  %337 = vmatprep.subr.bf16.mxu0 0
  %338 = vmatpush2.bf16.msra.mxu0 0
  %339 = vmatprep.subr.bf16.mxu0 0
  %340 = vmatpush2.bf16.msra.mxu0 0
  %341 = vmatprep.subr.bf16.mxu0 0
  %342 = vmatpush2.bf16.msra.mxu0 0
  %343 = vmatprep.mubr.bf16.mxu0 0
  %344 = vmatmul.mubr.bf16.gmra.mxu0 %v305
  %v345 = vpop.f32.mrf.mxu0
  %v346 = vadd.f32 0.0, %v345
  %v347 = vpop.f32.mrf.mxu0
  %v348 = vpop.f32.mrf.mxu0
  %v349 = vpop.f32.mrf.mxu0
  %350 = vdwg.mxu0
  %351 = vrot.lane.b32.xlu0 %v229, 64
  %v352 = vpop.permute.xlu0 %351
  %v354 = vsel %vm182, %v301, 0
  %v357 = vsel %vm307, %v352, 0
  %359 = vmatprep.subr.bf16.mxu0 0
  %360 = vmatpush1.bf16.msra.mxu0 0
  %361 = vmatprep.subr.bf16.mxu0 0
  %362 = vmatpush1.bf16.msra.mxu0 0
  %363 = vmatprep.subr.bf16.mxu0 0
  %364 = vmatpush1.bf16.msra.mxu0 0
  %365 = vmatprep.subr.bf16.mxu0 0
  %366 = vmatpush1.bf16.msra.mxu0 0
  %367 = vmatprep.subr.bf16.mxu0 0
  %368 = vmatpush1.bf16.msra.mxu0 0
  %369 = vmatprep.subr.bf16.mxu0 0
  %370 = vmatpush1.bf16.msra.mxu0 0
  %371 = vmatprep.subr.bf16.mxu0 0
  %372 = vmatpush1.bf16.msra.mxu0 0
  %373 = vmatprep.subr.bf16.mxu0 0
  %374 = vmatpush1.bf16.msra.mxu0 %v357
  %375 = vmatprep.subr.bf16.mxu0 0
  %376 = vmatpush2.bf16.msra.mxu0 0
  %377 = vmatprep.subr.bf16.mxu0 0
  %378 = vmatpush2.bf16.msra.mxu0 0
  %379 = vmatprep.subr.bf16.mxu0 0
  %380 = vmatpush2.bf16.msra.mxu0 0
  %381 = vmatprep.subr.bf16.mxu0 0
  %382 = vmatpush2.bf16.msra.mxu0 0
  %383 = vmatprep.subr.bf16.mxu0 0
  %384 = vmatpush2.bf16.msra.mxu0 0
  %385 = vmatprep.subr.bf16.mxu0 0
  %386 = vmatpush2.bf16.msra.mxu0 0
  %387 = vmatprep.subr.bf16.mxu0 0
  %388 = vmatpush2.bf16.msra.mxu0 0
  %389 = vmatprep.subr.bf16.mxu0 0
  %390 = vmatpush2.bf16.msra.mxu0 0
  %391 = vmatprep.mubr.bf16.mxu0 0
  %392 = vmatmul.mubr.bf16.gmra.mxu0 %v354
  %v393 = vpop.f32.mrf.mxu0
  %v394 = vadd.f32 0.0, %v393
  %v395 = vpop.f32.mrf.mxu0
  %v396 = vpop.f32.mrf.mxu0
  %v397 = vpop.f32.mrf.mxu0
  %398 = vdwg.mxu0
  %v399 = vpack.c.bf16 %v346, %v346
  %v400 = vpack.c.bf16 %v394, %v394
  %v401 = vld [vmem:[%s5] sm:$0xf]
  %402 = vrot.lane.b32.xlu0 %v173, 120
  %v403 = vpop.permute.xlu0 %402
  %404 = vrot.lane.b32.xlu0 %v179, 88
  %v405 = vpop.permute.xlu0 %404
  %v407 = vsel %vm182, %v403, 0
  %v410 = vsel %vm182, %v405, 0
  %412 = vmatprep.subr.bf16.mxu0 0
  %413 = vmatpush1.bf16.xpose.msra.mxu0 0
  %414 = vmatprep.subr.bf16.mxu0 0
  %415 = vmatpush1.bf16.xpose.msra.mxu0 0
  %416 = vmatprep.subr.bf16.mxu0 0
  %417 = vmatpush1.bf16.xpose.msra.mxu0 0
  %418 = vmatprep.subr.bf16.mxu0 0
  %419 = vmatpush1.bf16.xpose.msra.mxu0 0
  %420 = vmatprep.subr.bf16.mxu0 0
  %421 = vmatpush1.bf16.xpose.msra.mxu0 0
  %422 = vmatprep.subr.bf16.mxu0 0
  %423 = vmatpush1.bf16.xpose.msra.mxu0 0
  %424 = vmatprep.subr.bf16.mxu0 0
  %425 = vmatpush1.bf16.xpose.msra.mxu0 0
  %426 = vmatprep.subr.bf16.mxu0 0
  %427 = vmatpush1.bf16.xpose.msra.mxu0 %v410
  %428 = vmatprep.subr.bf16.mxu0 0
  %429 = vmatpush2.bf16.xpose.msra.mxu0 0
  %430 = vmatprep.subr.bf16.mxu0 0
  %431 = vmatpush2.bf16.xpose.msra.mxu0 0
  %432 = vmatprep.subr.bf16.mxu0 0
  %433 = vmatpush2.bf16.xpose.msra.mxu0 0
  %434 = vmatprep.subr.bf16.mxu0 0
  %435 = vmatpush2.bf16.xpose.msra.mxu0 0
  %436 = vmatprep.subr.bf16.mxu0 0
  %437 = vmatpush2.bf16.xpose.msra.mxu0 0
  %438 = vmatprep.subr.bf16.mxu0 0
  %439 = vmatpush2.bf16.xpose.msra.mxu0 0
  %440 = vmatprep.subr.bf16.mxu0 0
  %441 = vmatpush2.bf16.xpose.msra.mxu0 0
  %442 = vmatprep.subr.bf16.mxu0 0
  %443 = vmatpush2.bf16.xpose.msra.mxu0 0
  %444 = vmatprep.mubr.bf16.mxu0 0
  %445 = vmatmul.mubr.bf16.gmra.mxu0 %v407
  %v446 = vpop.f32.mrf.mxu0
  %v447 = vadd.f32 0.0, %v446
  %v448 = vpop.f32.mrf.mxu0
  %v449 = vpop.f32.mrf.mxu0
  %v450 = vpop.f32.mrf.mxu0
  %451 = vdwg.mxu0
  %452 = vrot.lane.b32.xlu0 %v174, 120
  %v453 = vpop.permute.xlu0 %452
  %454 = vrot.lane.b32.xlu0 %v229, 88
  %v455 = vpop.permute.xlu0 %454
  %v457 = vsel %vm182, %v453, 0
  %v460 = vsel %vm182, %v455, 0
  %462 = vmatprep.subr.bf16.mxu0 0
  %463 = vmatpush1.bf16.xpose.msra.mxu0 0
  %464 = vmatprep.subr.bf16.mxu0 0
  %465 = vmatpush1.bf16.xpose.msra.mxu0 0
  %466 = vmatprep.subr.bf16.mxu0 0
  %467 = vmatpush1.bf16.xpose.msra.mxu0 0
  %468 = vmatprep.subr.bf16.mxu0 0
  %469 = vmatpush1.bf16.xpose.msra.mxu0 0
  %470 = vmatprep.subr.bf16.mxu0 0
  %471 = vmatpush1.bf16.xpose.msra.mxu0 0
  %472 = vmatprep.subr.bf16.mxu0 0
  %473 = vmatpush1.bf16.xpose.msra.mxu0 0
  %474 = vmatprep.subr.bf16.mxu0 0
  %475 = vmatpush1.bf16.xpose.msra.mxu0 0
  %476 = vmatprep.subr.bf16.mxu0 0
  %477 = vmatpush1.bf16.xpose.msra.mxu0 %v460
  %478 = vmatprep.subr.bf16.mxu0 0
  %479 = vmatpush2.bf16.xpose.msra.mxu0 0
  %480 = vmatprep.subr.bf16.mxu0 0
  %481 = vmatpush2.bf16.xpose.msra.mxu0 0
  %482 = vmatprep.subr.bf16.mxu0 0
  %483 = vmatpush2.bf16.xpose.msra.mxu0 0
  %484 = vmatprep.subr.bf16.mxu0 0
  %485 = vmatpush2.bf16.xpose.msra.mxu0 0
  %486 = vmatprep.subr.bf16.mxu0 0
  %487 = vmatpush2.bf16.xpose.msra.mxu0 0
  %488 = vmatprep.subr.bf16.mxu0 0
  %489 = vmatpush2.bf16.xpose.msra.mxu0 0
  %490 = vmatprep.subr.bf16.mxu0 0
  %491 = vmatpush2.bf16.xpose.msra.mxu0 0
  %492 = vmatprep.subr.bf16.mxu0 0
  %493 = vmatpush2.bf16.xpose.msra.mxu0 0
  %494 = vmatprep.mubr.bf16.mxu0 0
  %495 = vmatmul.mubr.bf16.gmra.mxu0 %v457
  %v496 = vpop.f32.mrf.mxu0
  %v497 = vadd.f32 0.0, %v496
  %v498 = vpop.f32.mrf.mxu0
  %v499 = vpop.f32.mrf.mxu0
  %v500 = vpop.f32.mrf.mxu0
  %501 = vdwg.mxu0
  %v502 = vsel %vm182, %v447, -inf
  %503 = vmax.xlane.f32.xlu0 %v502
  %v504 = vpop.xlane.xlu0 %503
  %v505 = vsel %vm182, %v497, -inf
  %506 = vmax.xlane.f32.xlu0 %v505
  %v507 = vpop.xlane.xlu0 %506
  %v508 = vsub.f32 %v447, %v504
  %v509 = vsub.f32 %v497, %v507
  %v510 = vmul.f32 %v508, 1.442695
  %v511 = vpow.pop %v510
  %v512 = vmul.f32 %v509, 1.442695
  %v513 = vpow.pop %v512
  %v514 = vsel %vm182, %v511, 0.0
  %515 = vadd.xlane.f32.xlu0 %v514
  %v516 = vpop.xlane.xlu0 %515
  %v517 = vsel %vm182, %v513, 0.0
  %518 = vadd.xlane.f32.xlu0 %v517
  %v519 = vpop.xlane.xlu0 %518
  %v520 = vrcp.pop %v516
  %v521 = vrcp.pop %v519
  %v522 = vmul.f32 %v511, %v520
  %v523 = vmul.f32 %v513, %v521
  %v524 = vpack.c.bf16 %v522, %v522
  %v525 = vpack.c.bf16 %v523, %v523
  %526 = vrot.lane.b32.xlu0 %v179, 56
  %v527 = vpop.permute.xlu0 %526
  %v529 = vsel %vm182, %v524, 0
  %v532 = vsel %vm307, %v527, 0
  %534 = vmatprep.subr.bf16.mxu0 0
  %535 = vmatpush1.bf16.msra.mxu0 0
  %536 = vmatprep.subr.bf16.mxu0 0
  %537 = vmatpush1.bf16.msra.mxu0 0
  %538 = vmatprep.subr.bf16.mxu0 0
  %539 = vmatpush1.bf16.msra.mxu0 0
  %540 = vmatprep.subr.bf16.mxu0 0
  %541 = vmatpush1.bf16.msra.mxu0 0
  %542 = vmatprep.subr.bf16.mxu0 0
  %543 = vmatpush1.bf16.msra.mxu0 0
  %544 = vmatprep.subr.bf16.mxu0 0
  %545 = vmatpush1.bf16.msra.mxu0 0
  %546 = vmatprep.subr.bf16.mxu0 0
  %547 = vmatpush1.bf16.msra.mxu0 0
  %548 = vmatprep.subr.bf16.mxu0 0
  %549 = vmatpush1.bf16.msra.mxu0 %v532
  %550 = vmatprep.subr.bf16.mxu0 0
  %551 = vmatpush2.bf16.msra.mxu0 0
  %552 = vmatprep.subr.bf16.mxu0 0
  %553 = vmatpush2.bf16.msra.mxu0 0
  %554 = vmatprep.subr.bf16.mxu0 0
  %555 = vmatpush2.bf16.msra.mxu0 0
  %556 = vmatprep.subr.bf16.mxu0 0
  %557 = vmatpush2.bf16.msra.mxu0 0
  %558 = vmatprep.subr.bf16.mxu0 0
  %559 = vmatpush2.bf16.msra.mxu0 0
  %560 = vmatprep.subr.bf16.mxu0 0
  %561 = vmatpush2.bf16.msra.mxu0 0
  %562 = vmatprep.subr.bf16.mxu0 0
  %563 = vmatpush2.bf16.msra.mxu0 0
  %564 = vmatprep.subr.bf16.mxu0 0
  %565 = vmatpush2.bf16.msra.mxu0 0
  %566 = vmatprep.mubr.bf16.mxu0 0
  %567 = vmatmul.mubr.bf16.gmra.mxu0 %v529
  %v568 = vpop.f32.mrf.mxu0
  %v569 = vadd.f32 0.0, %v568
  %v570 = vpop.f32.mrf.mxu0
  %v571 = vpop.f32.mrf.mxu0
  %v572 = vpop.f32.mrf.mxu0
  %573 = vdwg.mxu0
  %574 = vrot.lane.b32.xlu0 %v229, 56
  %v575 = vpop.permute.xlu0 %574
  %v577 = vsel %vm182, %v525, 0
  %v580 = vsel %vm307, %v575, 0
  %582 = vmatprep.subr.bf16.mxu0 0
  %583 = vmatpush1.bf16.msra.mxu0 0
  %584 = vmatprep.subr.bf16.mxu0 0
  %585 = vmatpush1.bf16.msra.mxu0 0
  %586 = vmatprep.subr.bf16.mxu0 0
  %587 = vmatpush1.bf16.msra.mxu0 0
  %588 = vmatprep.subr.bf16.mxu0 0
  %589 = vmatpush1.bf16.msra.mxu0 0
  %590 = vmatprep.subr.bf16.mxu0 0
  %591 = vmatpush1.bf16.msra.mxu0 0
  %592 = vmatprep.subr.bf16.mxu0 0
  %593 = vmatpush1.bf16.msra.mxu0 0
  %594 = vmatprep.subr.bf16.mxu0 0
  %595 = vmatpush1.bf16.msra.mxu0 0
  %596 = vmatprep.subr.bf16.mxu0 0
  %597 = vmatpush1.bf16.msra.mxu0 %v580
  %598 = vmatprep.subr.bf16.mxu0 0
  %599 = vmatpush2.bf16.msra.mxu0 0
  %600 = vmatprep.subr.bf16.mxu0 0
  %601 = vmatpush2.bf16.msra.mxu0 0
  %602 = vmatprep.subr.bf16.mxu0 0
  %603 = vmatpush2.bf16.msra.mxu0 0
  %604 = vmatprep.subr.bf16.mxu0 0
  %605 = vmatpush2.bf16.msra.mxu0 0
  %606 = vmatprep.subr.bf16.mxu0 0
  %607 = vmatpush2.bf16.msra.mxu0 0
  %608 = vmatprep.subr.bf16.mxu0 0
  %609 = vmatpush2.bf16.msra.mxu0 0
  %610 = vmatprep.subr.bf16.mxu0 0
  %611 = vmatpush2.bf16.msra.mxu0 0
  %612 = vmatprep.subr.bf16.mxu0 0
  %613 = vmatpush2.bf16.msra.mxu0 0
  %614 = vmatprep.mubr.bf16.mxu0 0
  %615 = vmatmul.mubr.bf16.gmra.mxu0 %v577
  %v616 = vpop.f32.mrf.mxu0
  %v617 = vadd.f32 0.0, %v616
  %v618 = vpop.f32.mrf.mxu0
  %v619 = vpop.f32.mrf.mxu0
  %v620 = vpop.f32.mrf.mxu0
  %621 = vdwg.mxu0
  %v622 = vpack.c.bf16 %v569, %v569
  %v623 = vpack.c.bf16 %v617, %v617
  %s624 = scalar_lea.vmem %s5, 4
  %v625 = vld [vmem:[%s624] sm:$0xf]
  %v628 = vunpack.c.l.b16 %v622
  %v629 = vunpack.c.l.b16 %v623
  %v630 = vpack.c.b16 %v629, %v628
  %v632 = vsel %vm182, %v630, 0
  %v635 = vsel %vm307, %v625, 0
  %637 = vmatprep.subr.bf16.mxu0 0
  %638 = vmatpush1.bf16.msra.mxu0 0
  %639 = vmatprep.subr.bf16.mxu0 0
  %640 = vmatpush1.bf16.msra.mxu0 0
  %641 = vmatprep.subr.bf16.mxu0 0
  %642 = vmatpush1.bf16.msra.mxu0 0
  %643 = vmatprep.subr.bf16.mxu0 0
  %644 = vmatpush1.bf16.msra.mxu0 0
  %645 = vmatprep.subr.bf16.mxu0 0
  %646 = vmatpush1.bf16.msra.mxu0 0
  %647 = vmatprep.subr.bf16.mxu0 0
  %648 = vmatpush1.bf16.msra.mxu0 0
  %649 = vmatprep.subr.bf16.mxu0 0
  %650 = vmatpush1.bf16.msra.mxu0 0
  %651 = vmatprep.subr.bf16.mxu0 0
  %652 = vmatpush1.bf16.msra.mxu0 %v635
  %653 = vmatprep.subr.bf16.mxu0 0
  %654 = vmatpush2.bf16.msra.mxu0 0
  %655 = vmatprep.subr.bf16.mxu0 0
  %656 = vmatpush2.bf16.msra.mxu0 0
  %657 = vmatprep.subr.bf16.mxu0 0
  %658 = vmatpush2.bf16.msra.mxu0 0
  %659 = vmatprep.subr.bf16.mxu0 0
  %660 = vmatpush2.bf16.msra.mxu0 0
  %661 = vmatprep.subr.bf16.mxu0 0
  %662 = vmatpush2.bf16.msra.mxu0 0
  %663 = vmatprep.subr.bf16.mxu0 0
  %664 = vmatpush2.bf16.msra.mxu0 0
  %665 = vmatprep.subr.bf16.mxu0 0
  %666 = vmatpush2.bf16.msra.mxu0 0
  %667 = vmatprep.subr.bf16.mxu0 0
  %668 = vmatpush2.bf16.msra.mxu0 0
  %669 = vmatprep.mubr.bf16.mxu0 0
  %670 = vmatmul.mubr.bf16.gmra.mxu0 %v632
  %v671 = vpop.f32.mrf.mxu0
  %v672 = vadd.f32 0.0, %v671
  %v673 = vpop.f32.mrf.mxu0
  %v674 = vpop.f32.mrf.mxu0
  %v675 = vadd.f32 0.0, %v674
  %v676 = vpop.f32.mrf.mxu0
  %677 = vdwg.mxu0
  %v680 = vunpack.c.l.b16 %v399
  %v681 = vunpack.c.l.b16 %v400
  %v682 = vpack.c.b16 %v681, %v680
  %v684 = vsel %vm182, %v682, 0
  %v687 = vsel %vm307, %v401, 0
  %689 = vmatprep.subr.bf16.mxu0 0
  %690 = vmatpush1.bf16.msra.mxu0 0
  %691 = vmatprep.subr.bf16.mxu0 0
  %692 = vmatpush1.bf16.msra.mxu0 0
  %693 = vmatprep.subr.bf16.mxu0 0
  %694 = vmatpush1.bf16.msra.mxu0 0
  %695 = vmatprep.subr.bf16.mxu0 0
  %696 = vmatpush1.bf16.msra.mxu0 0
  %697 = vmatprep.subr.bf16.mxu0 0
  %698 = vmatpush1.bf16.msra.mxu0 0
  %699 = vmatprep.subr.bf16.mxu0 0
  %700 = vmatpush1.bf16.msra.mxu0 0
  %701 = vmatprep.subr.bf16.mxu0 0
  %702 = vmatpush1.bf16.msra.mxu0 0
  %703 = vmatprep.subr.bf16.mxu0 0
  %704 = vmatpush1.bf16.msra.mxu0 %v687
  %705 = vmatprep.subr.bf16.mxu0 0
  %706 = vmatpush2.bf16.msra.mxu0 0
  %707 = vmatprep.subr.bf16.mxu0 0
  %708 = vmatpush2.bf16.msra.mxu0 0
  %709 = vmatprep.subr.bf16.mxu0 0
  %710 = vmatpush2.bf16.msra.mxu0 0
  %711 = vmatprep.subr.bf16.mxu0 0
  %712 = vmatpush2.bf16.msra.mxu0 0
  %713 = vmatprep.subr.bf16.mxu0 0
  %714 = vmatpush2.bf16.msra.mxu0 0
  %715 = vmatprep.subr.bf16.mxu0 0
  %716 = vmatpush2.bf16.msra.mxu0 0
  %717 = vmatprep.subr.bf16.mxu0 0
  %718 = vmatpush2.bf16.msra.mxu0 0
  %719 = vmatprep.subr.bf16.mxu0 0
  %720 = vmatpush2.bf16.msra.mxu0 0
  %721 = vmatprep.mubr.bf16.mxu0 0
  %722 = vmatmul.mubr.bf16.gmra.mxu0 %v684
  %v723 = vpop.f32.mrf.mxu0
  %v724 = vadd.f32 %v672, %v723
  %v725 = vpop.f32.mrf.mxu0
  %v726 = vpop.f32.mrf.mxu0
  %v727 = vadd.f32 %v675, %v726
  %v728 = vpop.f32.mrf.mxu0
  %729 = vdwg.mxu0
  %730 = vrot.lane.b32.xlu0 %v173, 112
  %v731 = vpop.permute.xlu0 %730
  %732 = vrot.lane.b32.xlu0 %v179, 80
  %v733 = vpop.permute.xlu0 %732
  %v735 = vsel %vm182, %v731, 0
  %v738 = vsel %vm182, %v733, 0
  %740 = vmatprep.subr.bf16.mxu0 0
  %741 = vmatpush1.bf16.xpose.msra.mxu0 0
  %742 = vmatprep.subr.bf16.mxu0 0
  %743 = vmatpush1.bf16.xpose.msra.mxu0 0
  %744 = vmatprep.subr.bf16.mxu0 0
  %745 = vmatpush1.bf16.xpose.msra.mxu0 0
  %746 = vmatprep.subr.bf16.mxu0 0
  %747 = vmatpush1.bf16.xpose.msra.mxu0 0
  %748 = vmatprep.subr.bf16.mxu0 0
  %749 = vmatpush1.bf16.xpose.msra.mxu0 0
  %750 = vmatprep.subr.bf16.mxu0 0
  %751 = vmatpush1.bf16.xpose.msra.mxu0 0
  %752 = vmatprep.subr.bf16.mxu0 0
  %753 = vmatpush1.bf16.xpose.msra.mxu0 0
  %754 = vmatprep.subr.bf16.mxu0 0
  %755 = vmatpush1.bf16.xpose.msra.mxu0 %v738
  %756 = vmatprep.subr.bf16.mxu0 0
  %757 = vmatpush2.bf16.xpose.msra.mxu0 0
  %758 = vmatprep.subr.bf16.mxu0 0
  %759 = vmatpush2.bf16.xpose.msra.mxu0 0
  %760 = vmatprep.subr.bf16.mxu0 0
  %761 = vmatpush2.bf16.xpose.msra.mxu0 0
  %762 = vmatprep.subr.bf16.mxu0 0
  %763 = vmatpush2.bf16.xpose.msra.mxu0 0
  %764 = vmatprep.subr.bf16.mxu0 0
  %765 = vmatpush2.bf16.xpose.msra.mxu0 0
  %766 = vmatprep.subr.bf16.mxu0 0
  %767 = vmatpush2.bf16.xpose.msra.mxu0 0
  %768 = vmatprep.subr.bf16.mxu0 0
  %769 = vmatpush2.bf16.xpose.msra.mxu0 0
  %770 = vmatprep.subr.bf16.mxu0 0
  %771 = vmatpush2.bf16.xpose.msra.mxu0 0
  %772 = vmatprep.mubr.bf16.mxu0 0
  %773 = vmatmul.mubr.bf16.gmra.mxu0 %v735
  %v774 = vpop.f32.mrf.mxu0
  %v775 = vadd.f32 0.0, %v774
  %v776 = vpop.f32.mrf.mxu0
  %v777 = vpop.f32.mrf.mxu0
  %v778 = vpop.f32.mrf.mxu0
  %779 = vdwg.mxu0
  %780 = vrot.lane.b32.xlu0 %v174, 112
  %v781 = vpop.permute.xlu0 %780
  %782 = vrot.lane.b32.xlu0 %v229, 80
  %v783 = vpop.permute.xlu0 %782
  %v785 = vsel %vm182, %v781, 0
  %v788 = vsel %vm182, %v783, 0
  %790 = vmatprep.subr.bf16.mxu0 0
  %791 = vmatpush1.bf16.xpose.msra.mxu0 0
  %792 = vmatprep.subr.bf16.mxu0 0
  %793 = vmatpush1.bf16.xpose.msra.mxu0 0
  %794 = vmatprep.subr.bf16.mxu0 0
  %795 = vmatpush1.bf16.xpose.msra.mxu0 0
  %796 = vmatprep.subr.bf16.mxu0 0
  %797 = vmatpush1.bf16.xpose.msra.mxu0 0
  %798 = vmatprep.subr.bf16.mxu0 0
  %799 = vmatpush1.bf16.xpose.msra.mxu0 0
  %800 = vmatprep.subr.bf16.mxu0 0
  %801 = vmatpush1.bf16.xpose.msra.mxu0 0
  %802 = vmatprep.subr.bf16.mxu0 0
  %803 = vmatpush1.bf16.xpose.msra.mxu0 0
  %804 = vmatprep.subr.bf16.mxu0 0
  %805 = vmatpush1.bf16.xpose.msra.mxu0 %v788
  %806 = vmatprep.subr.bf16.mxu0 0
  %807 = vmatpush2.bf16.xpose.msra.mxu0 0
  %808 = vmatprep.subr.bf16.mxu0 0
  %809 = vmatpush2.bf16.xpose.msra.mxu0 0
  %810 = vmatprep.subr.bf16.mxu0 0
  %811 = vmatpush2.bf16.xpose.msra.mxu0 0
  %812 = vmatprep.subr.bf16.mxu0 0
  %813 = vmatpush2.bf16.xpose.msra.mxu0 0
  %814 = vmatprep.subr.bf16.mxu0 0
  %815 = vmatpush2.bf16.xpose.msra.mxu0 0
  %816 = vmatprep.subr.bf16.mxu0 0
  %817 = vmatpush2.bf16.xpose.msra.mxu0 0
  %818 = vmatprep.subr.bf16.mxu0 0
  %819 = vmatpush2.bf16.xpose.msra.mxu0 0
  %820 = vmatprep.subr.bf16.mxu0 0
  %821 = vmatpush2.bf16.xpose.msra.mxu0 0
  %822 = vmatprep.mubr.bf16.mxu0 0
  %823 = vmatmul.mubr.bf16.gmra.mxu0 %v785
  %v824 = vpop.f32.mrf.mxu0
  %v825 = vadd.f32 0.0, %v824
  %v826 = vpop.f32.mrf.mxu0
  %v827 = vpop.f32.mrf.mxu0
  %v828 = vpop.f32.mrf.mxu0
  %829 = vdwg.mxu0
  %v830 = vsel %vm182, %v775, -inf
  %831 = vmax.xlane.f32.xlu0 %v830
  %v832 = vpop.xlane.xlu0 %831
  %v833 = vsel %vm182, %v825, -inf
  %834 = vmax.xlane.f32.xlu0 %v833
  %v835 = vpop.xlane.xlu0 %834
  %v836 = vsub.f32 %v775, %v832
  %v837 = vsub.f32 %v825, %v835
  %v838 = vmul.f32 %v836, 1.442695
  %v839 = vpow.pop %v838
  %v840 = vmul.f32 %v837, 1.442695
  %v841 = vpow.pop %v840
  %v842 = vsel %vm182, %v839, 0.0
  %843 = vadd.xlane.f32.xlu0 %v842
  %v844 = vpop.xlane.xlu0 %843
  %v845 = vsel %vm182, %v841, 0.0
  %846 = vadd.xlane.f32.xlu0 %v845
  %v847 = vpop.xlane.xlu0 %846
  %v848 = vrcp.pop %v844
  %v849 = vrcp.pop %v847
  %v850 = vmul.f32 %v839, %v848
  %v851 = vmul.f32 %v841, %v849
  %v852 = vpack.c.bf16 %v850, %v850
  %v853 = vpack.c.bf16 %v851, %v851
  %854 = vrot.lane.b32.xlu0 %v179, 48
  %v855 = vpop.permute.xlu0 %854
  %v857 = vsel %vm182, %v852, 0
  %v860 = vsel %vm307, %v855, 0
  %862 = vmatprep.subr.bf16.mxu0 0
  %863 = vmatpush1.bf16.msra.mxu0 0
  %864 = vmatprep.subr.bf16.mxu0 0
  %865 = vmatpush1.bf16.msra.mxu0 0
  %866 = vmatprep.subr.bf16.mxu0 0
  %867 = vmatpush1.bf16.msra.mxu0 0
  %868 = vmatprep.subr.bf16.mxu0 0
  %869 = vmatpush1.bf16.msra.mxu0 0
  %870 = vmatprep.subr.bf16.mxu0 0
  %871 = vmatpush1.bf16.msra.mxu0 0
  %872 = vmatprep.subr.bf16.mxu0 0
  %873 = vmatpush1.bf16.msra.mxu0 0
  %874 = vmatprep.subr.bf16.mxu0 0
  %875 = vmatpush1.bf16.msra.mxu0 0
  %876 = vmatprep.subr.bf16.mxu0 0
  %877 = vmatpush1.bf16.msra.mxu0 %v860
  %878 = vmatprep.subr.bf16.mxu0 0
  %879 = vmatpush2.bf16.msra.mxu0 0
  %880 = vmatprep.subr.bf16.mxu0 0
  %881 = vmatpush2.bf16.msra.mxu0 0
  %882 = vmatprep.subr.bf16.mxu0 0
  %883 = vmatpush2.bf16.msra.mxu0 0
  %884 = vmatprep.subr.bf16.mxu0 0
  %885 = vmatpush2.bf16.msra.mxu0 0
  %886 = vmatprep.subr.bf16.mxu0 0
  %887 = vmatpush2.bf16.msra.mxu0 0
  %888 = vmatprep.subr.bf16.mxu0 0
  %889 = vmatpush2.bf16.msra.mxu0 0
  %890 = vmatprep.subr.bf16.mxu0 0
  %891 = vmatpush2.bf16.msra.mxu0 0
  %892 = vmatprep.subr.bf16.mxu0 0
  %893 = vmatpush2.bf16.msra.mxu0 0
  %894 = vmatprep.mubr.bf16.mxu0 0
  %895 = vmatmul.mubr.bf16.gmra.mxu0 %v857
  %v896 = vpop.f32.mrf.mxu0
  %v897 = vadd.f32 0.0, %v896
  %v898 = vpop.f32.mrf.mxu0
  %v899 = vpop.f32.mrf.mxu0
  %v900 = vpop.f32.mrf.mxu0
  %901 = vdwg.mxu0
  %902 = vrot.lane.b32.xlu0 %v229, 48
  %v903 = vpop.permute.xlu0 %902
  %v905 = vsel %vm182, %v853, 0
  %v908 = vsel %vm307, %v903, 0
  %910 = vmatprep.subr.bf16.mxu0 0
  %911 = vmatpush1.bf16.msra.mxu0 0
  %912 = vmatprep.subr.bf16.mxu0 0
  %913 = vmatpush1.bf16.msra.mxu0 0
  %914 = vmatprep.subr.bf16.mxu0 0
  %915 = vmatpush1.bf16.msra.mxu0 0
  %916 = vmatprep.subr.bf16.mxu0 0
  %917 = vmatpush1.bf16.msra.mxu0 0
  %918 = vmatprep.subr.bf16.mxu0 0
  %919 = vmatpush1.bf16.msra.mxu0 0
  %920 = vmatprep.subr.bf16.mxu0 0
  %921 = vmatpush1.bf16.msra.mxu0 0
  %922 = vmatprep.subr.bf16.mxu0 0
  %923 = vmatpush1.bf16.msra.mxu0 0
  %924 = vmatprep.subr.bf16.mxu0 0
  %925 = vmatpush1.bf16.msra.mxu0 %v908
  %926 = vmatprep.subr.bf16.mxu0 0
  %927 = vmatpush2.bf16.msra.mxu0 0
  %928 = vmatprep.subr.bf16.mxu0 0
  %929 = vmatpush2.bf16.msra.mxu0 0
  %930 = vmatprep.subr.bf16.mxu0 0
  %931 = vmatpush2.bf16.msra.mxu0 0
  %932 = vmatprep.subr.bf16.mxu0 0
  %933 = vmatpush2.bf16.msra.mxu0 0
  %934 = vmatprep.subr.bf16.mxu0 0
  %935 = vmatpush2.bf16.msra.mxu0 0
  %936 = vmatprep.subr.bf16.mxu0 0
  %937 = vmatpush2.bf16.msra.mxu0 0
  %938 = vmatprep.subr.bf16.mxu0 0
  %939 = vmatpush2.bf16.msra.mxu0 0
  %940 = vmatprep.subr.bf16.mxu0 0
  %941 = vmatpush2.bf16.msra.mxu0 0
  %942 = vmatprep.mubr.bf16.mxu0 0
  %943 = vmatmul.mubr.bf16.gmra.mxu0 %v905
  %v944 = vpop.f32.mrf.mxu0
  %v945 = vadd.f32 0.0, %v944
  %v946 = vpop.f32.mrf.mxu0
  %v947 = vpop.f32.mrf.mxu0
  %v948 = vpop.f32.mrf.mxu0
  %949 = vdwg.mxu0
  %v950 = vpack.c.bf16 %v897, %v897
  %v951 = vpack.c.bf16 %v945, %v945
  %s952 = scalar_lea.vmem %s5, 8
  %v953 = vld [vmem:[%s952] sm:$0xf]
  %v956 = vunpack.c.l.b16 %v950
  %v957 = vunpack.c.l.b16 %v951
  %v958 = vpack.c.b16 %v957, %v956
  %v960 = vsel %vm182, %v958, 0
  %v963 = vsel %vm307, %v953, 0
  %965 = vmatprep.subr.bf16.mxu0 0
  %966 = vmatpush1.bf16.msra.mxu0 0
  %967 = vmatprep.subr.bf16.mxu0 0
  %968 = vmatpush1.bf16.msra.mxu0 0
  %969 = vmatprep.subr.bf16.mxu0 0
  %970 = vmatpush1.bf16.msra.mxu0 0
  %971 = vmatprep.subr.bf16.mxu0 0
  %972 = vmatpush1.bf16.msra.mxu0 0
  %973 = vmatprep.subr.bf16.mxu0 0
  %974 = vmatpush1.bf16.msra.mxu0 0
  %975 = vmatprep.subr.bf16.mxu0 0
  %976 = vmatpush1.bf16.msra.mxu0 0
  %977 = vmatprep.subr.bf16.mxu0 0
  %978 = vmatpush1.bf16.msra.mxu0 0
  %979 = vmatprep.subr.bf16.mxu0 0
  %980 = vmatpush1.bf16.msra.mxu0 %v963
  %981 = vmatprep.subr.bf16.mxu0 0
  %982 = vmatpush2.bf16.msra.mxu0 0
  %983 = vmatprep.subr.bf16.mxu0 0
  %984 = vmatpush2.bf16.msra.mxu0 0
  %985 = vmatprep.subr.bf16.mxu0 0
  %986 = vmatpush2.bf16.msra.mxu0 0
  %987 = vmatprep.subr.bf16.mxu0 0
  %988 = vmatpush2.bf16.msra.mxu0 0
  %989 = vmatprep.subr.bf16.mxu0 0
  %990 = vmatpush2.bf16.msra.mxu0 0
  %991 = vmatprep.subr.bf16.mxu0 0
  %992 = vmatpush2.bf16.msra.mxu0 0
  %993 = vmatprep.subr.bf16.mxu0 0
  %994 = vmatpush2.bf16.msra.mxu0 0
  %995 = vmatprep.subr.bf16.mxu0 0
  %996 = vmatpush2.bf16.msra.mxu0 0
  %997 = vmatprep.mubr.bf16.mxu0 0
  %998 = vmatmul.mubr.bf16.gmra.mxu0 %v960
  %v999 = vpop.f32.mrf.mxu0
  %v1000 = vadd.f32 0.0, %v999
  %v1001 = vpop.f32.mrf.mxu0
  %v1002 = vpop.f32.mrf.mxu0
  %v1003 = vadd.f32 0.0, %v1002
  %v1004 = vpop.f32.mrf.mxu0
  %1005 = vdwg.mxu0
  %v1006 = vadd.f32 %v724, %v1000
  %v1007 = vadd.f32 %v727, %v1003
  %1008 = vrot.lane.b32.xlu0 %v173, 104
  %v1009 = vpop.permute.xlu0 %1008
  %1010 = vrot.lane.b32.xlu0 %v179, 72
  %v1011 = vpop.permute.xlu0 %1010
  %v1013 = vsel %vm182, %v1009, 0
  %v1016 = vsel %vm182, %v1011, 0
  %1018 = vmatprep.subr.bf16.mxu0 0
  %1019 = vmatpush1.bf16.xpose.msra.mxu0 0
  %1020 = vmatprep.subr.bf16.mxu0 0
  %1021 = vmatpush1.bf16.xpose.msra.mxu0 0
  %1022 = vmatprep.subr.bf16.mxu0 0
  %1023 = vmatpush1.bf16.xpose.msra.mxu0 0
  %1024 = vmatprep.subr.bf16.mxu0 0
  %1025 = vmatpush1.bf16.xpose.msra.mxu0 0
  %1026 = vmatprep.subr.bf16.mxu0 0
  %1027 = vmatpush1.bf16.xpose.msra.mxu0 0
  %1028 = vmatprep.subr.bf16.mxu0 0
  %1029 = vmatpush1.bf16.xpose.msra.mxu0 0
  %1030 = vmatprep.subr.bf16.mxu0 0
  %1031 = vmatpush1.bf16.xpose.msra.mxu0 0
  %1032 = vmatprep.subr.bf16.mxu0 0
  %1033 = vmatpush1.bf16.xpose.msra.mxu0 %v1016
  %1034 = vmatprep.subr.bf16.mxu0 0
  %1035 = vmatpush2.bf16.xpose.msra.mxu0 0
  %1036 = vmatprep.subr.bf16.mxu0 0
  %1037 = vmatpush2.bf16.xpose.msra.mxu0 0
  %1038 = vmatprep.subr.bf16.mxu0 0
  %1039 = vmatpush2.bf16.xpose.msra.mxu0 0
  %1040 = vmatprep.subr.bf16.mxu0 0
  %1041 = vmatpush2.bf16.xpose.msra.mxu0 0
  %1042 = vmatprep.subr.bf16.mxu0 0
  %1043 = vmatpush2.bf16.xpose.msra.mxu0 0
  %1044 = vmatprep.subr.bf16.mxu0 0
  %1045 = vmatpush2.bf16.xpose.msra.mxu0 0
  %1046 = vmatprep.subr.bf16.mxu0 0
  %1047 = vmatpush2.bf16.xpose.msra.mxu0 0
  %1048 = vmatprep.subr.bf16.mxu0 0
  %1049 = vmatpush2.bf16.xpose.msra.mxu0 0
  %1050 = vmatprep.mubr.bf16.mxu0 0
  %1051 = vmatmul.mubr.bf16.gmra.mxu0 %v1013
  %v1052 = vpop.f32.mrf.mxu0
  %v1053 = vadd.f32 0.0, %v1052
  %v1054 = vpop.f32.mrf.mxu0
  %v1055 = vpop.f32.mrf.mxu0
  %v1056 = vpop.f32.mrf.mxu0
  %1057 = vdwg.mxu0
  %1058 = vrot.lane.b32.xlu0 %v174, 104
  %v1059 = vpop.permute.xlu0 %1058
  %1060 = vrot.lane.b32.xlu0 %v229, 72
  %v1061 = vpop.permute.xlu0 %1060
  %v1063 = vsel %vm182, %v1059, 0
  %v1066 = vsel %vm182, %v1061, 0
  %1068 = vmatprep.subr.bf16.mxu0 0
  %1069 = vmatpush1.bf16.xpose.msra.mxu0 0
  %1070 = vmatprep.subr.bf16.mxu0 0
  %1071 = vmatpush1.bf16.xpose.msra.mxu0 0
  %1072 = vmatprep.subr.bf16.mxu0 0
  %1073 = vmatpush1.bf16.xpose.msra.mxu0 0
  %1074 = vmatprep.subr.bf16.mxu0 0
  %1075 = vmatpush1.bf16.xpose.msra.mxu0 0
  %1076 = vmatprep.subr.bf16.mxu0 0
  %1077 = vmatpush1.bf16.xpose.msra.mxu0 0
  %1078 = vmatprep.subr.bf16.mxu0 0
  %1079 = vmatpush1.bf16.xpose.msra.mxu0 0
  %1080 = vmatprep.subr.bf16.mxu0 0
  %1081 = vmatpush1.bf16.xpose.msra.mxu0 0
  %1082 = vmatprep.subr.bf16.mxu0 0
  %1083 = vmatpush1.bf16.xpose.msra.mxu0 %v1066
  %1084 = vmatprep.subr.bf16.mxu0 0
  %1085 = vmatpush2.bf16.xpose.msra.mxu0 0
  %1086 = vmatprep.subr.bf16.mxu0 0
  %1087 = vmatpush2.bf16.xpose.msra.mxu0 0
  %1088 = vmatprep.subr.bf16.mxu0 0
  %1089 = vmatpush2.bf16.xpose.msra.mxu0 0
  %1090 = vmatprep.subr.bf16.mxu0 0
  %1091 = vmatpush2.bf16.xpose.msra.mxu0 0
  %1092 = vmatprep.subr.bf16.mxu0 0
  %1093 = vmatpush2.bf16.xpose.msra.mxu0 0
  %1094 = vmatprep.subr.bf16.mxu0 0
  %1095 = vmatpush2.bf16.xpose.msra.mxu0 0
  %1096 = vmatprep.subr.bf16.mxu0 0
  %1097 = vmatpush2.bf16.xpose.msra.mxu0 0
  %1098 = vmatprep.subr.bf16.mxu0 0
  %1099 = vmatpush2.bf16.xpose.msra.mxu0 0
  %1100 = vmatprep.mubr.bf16.mxu0 0
  %1101 = vmatmul.mubr.bf16.gmra.mxu0 %v1063
  %v1102 = vpop.f32.mrf.mxu0
  %v1103 = vadd.f32 0.0, %v1102
  %v1104 = vpop.f32.mrf.mxu0
  %v1105 = vpop.f32.mrf.mxu0
  %v1106 = vpop.f32.mrf.mxu0
  %1107 = vdwg.mxu0
  %v1108 = vsel %vm182, %v1053, -inf
  %1109 = vmax.xlane.f32.xlu0 %v1108
  %v1110 = vpop.xlane.xlu0 %1109
  %v1111 = vsel %vm182, %v1103, -inf
  %1112 = vmax.xlane.f32.xlu0 %v1111
  %v1113 = vpop.xlane.xlu0 %1112
  %v1114 = vsub.f32 %v1053, %v1110
  %v1115 = vsub.f32 %v1103, %v1113
  %v1116 = vmul.f32 %v1114, 1.442695
  %v1117 = vpow.pop %v1116
  %v1118 = vmul.f32 %v1115, 1.442695
  %v1119 = vpow.pop %v1118
  %v1120 = vsel %vm182, %v1117, 0.0
  %1121 = vadd.xlane.f32.xlu0 %v1120
  %v1122 = vpop.xlane.xlu0 %1121
  %v1123 = vsel %vm182, %v1119, 0.0
  %1124 = vadd.xlane.f32.xlu0 %v1123
  %v1125 = vpop.xlane.xlu0 %1124
  %v1126 = vrcp.pop %v1122
  %v1127 = vrcp.pop %v1125
  %v1128 = vmul.f32 %v1117, %v1126
  %v1129 = vmul.f32 %v1119, %v1127
  %v1130 = vpack.c.bf16 %v1128, %v1128
  %v1131 = vpack.c.bf16 %v1129, %v1129
  %1132 = vrot.lane.b32.xlu0 %v179, 40
  %v1133 = vpop.permute.xlu0 %1132
  %v1135 = vsel %vm182, %v1130, 0
  %v1138 = vsel %vm307, %v1133, 0
  %1140 = vmatprep.subr.bf16.mxu0 0
  %1141 = vmatpush1.bf16.msra.mxu0 0
  %1142 = vmatprep.subr.bf16.mxu0 0
  %1143 = vmatpush1.bf16.msra.mxu0 0
  %1144 = vmatprep.subr.bf16.mxu0 0
  %1145 = vmatpush1.bf16.msra.mxu0 0
  %1146 = vmatprep.subr.bf16.mxu0 0
  %1147 = vmatpush1.bf16.msra.mxu0 0
  %1148 = vmatprep.subr.bf16.mxu0 0
  %1149 = vmatpush1.bf16.msra.mxu0 0
  %1150 = vmatprep.subr.bf16.mxu0 0
  %1151 = vmatpush1.bf16.msra.mxu0 0
  %1152 = vmatprep.subr.bf16.mxu0 0
  %1153 = vmatpush1.bf16.msra.mxu0 0
  %1154 = vmatprep.subr.bf16.mxu0 0
  %1155 = vmatpush1.bf16.msra.mxu0 %v1138
  %1156 = vmatprep.subr.bf16.mxu0 0
  %1157 = vmatpush2.bf16.msra.mxu0 0
  %1158 = vmatprep.subr.bf16.mxu0 0
  %1159 = vmatpush2.bf16.msra.mxu0 0
  %1160 = vmatprep.subr.bf16.mxu0 0
  %1161 = vmatpush2.bf16.msra.mxu0 0
  %1162 = vmatprep.subr.bf16.mxu0 0
  %1163 = vmatpush2.bf16.msra.mxu0 0
  %1164 = vmatprep.subr.bf16.mxu0 0
  %1165 = vmatpush2.bf16.msra.mxu0 0
  %1166 = vmatprep.subr.bf16.mxu0 0
  %1167 = vmatpush2.bf16.msra.mxu0 0
  %1168 = vmatprep.subr.bf16.mxu0 0
  %1169 = vmatpush2.bf16.msra.mxu0 0
  %1170 = vmatprep.subr.bf16.mxu0 0
  %1171 = vmatpush2.bf16.msra.mxu0 0
  %1172 = vmatprep.mubr.bf16.mxu0 0
  %1173 = vmatmul.mubr.bf16.gmra.mxu0 %v1135
  %v1174 = vpop.f32.mrf.mxu0
  %v1175 = vadd.f32 0.0, %v1174
  %v1176 = vpop.f32.mrf.mxu0
  %v1177 = vpop.f32.mrf.mxu0
  %v1178 = vpop.f32.mrf.mxu0
  %1179 = vdwg.mxu0
  %1180 = vrot.lane.b32.xlu0 %v229, 40
  %v1181 = vpop.permute.xlu0 %1180
  %v1183 = vsel %vm182, %v1131, 0
  %v1186 = vsel %vm307, %v1181, 0
  %1188 = vmatprep.subr.bf16.mxu0 0
  %1189 = vmatpush1.bf16.msra.mxu0 0
  %1190 = vmatprep.subr.bf16.mxu0 0
  %1191 = vmatpush1.bf16.msra.mxu0 0
  %1192 = vmatprep.subr.bf16.mxu0 0
  %1193 = vmatpush1.bf16.msra.mxu0 0
  %1194 = vmatprep.subr.bf16.mxu0 0
  %1195 = vmatpush1.bf16.msra.mxu0 0
  %1196 = vmatprep.subr.bf16.mxu0 0
  %1197 = vmatpush1.bf16.msra.mxu0 0
  %1198 = vmatprep.subr.bf16.mxu0 0
  %1199 = vmatpush1.bf16.msra.mxu0 0
  %1200 = vmatprep.subr.bf16.mxu0 0
  %1201 = vmatpush1.bf16.msra.mxu0 0
  %1202 = vmatprep.subr.bf16.mxu0 0
  %1203 = vmatpush1.bf16.msra.mxu0 %v1186
  %1204 = vmatprep.subr.bf16.mxu0 0
  %1205 = vmatpush2.bf16.msra.mxu0 0
  %1206 = vmatprep.subr.bf16.mxu0 0
  %1207 = vmatpush2.bf16.msra.mxu0 0
  %1208 = vmatprep.subr.bf16.mxu0 0
  %1209 = vmatpush2.bf16.msra.mxu0 0
  %1210 = vmatprep.subr.bf16.mxu0 0
  %1211 = vmatpush2.bf16.msra.mxu0 0
  %1212 = vmatprep.subr.bf16.mxu0 0
  %1213 = vmatpush2.bf16.msra.mxu0 0
  %1214 = vmatprep.subr.bf16.mxu0 0
  %1215 = vmatpush2.bf16.msra.mxu0 0
  %1216 = vmatprep.subr.bf16.mxu0 0
  %1217 = vmatpush2.bf16.msra.mxu0 0
  %1218 = vmatprep.subr.bf16.mxu0 0
  %1219 = vmatpush2.bf16.msra.mxu0 0
  %1220 = vmatprep.mubr.bf16.mxu0 0
  %1221 = vmatmul.mubr.bf16.gmra.mxu0 %v1183
  %v1222 = vpop.f32.mrf.mxu0
  %v1223 = vadd.f32 0.0, %v1222
  %v1224 = vpop.f32.mrf.mxu0
  %v1225 = vpop.f32.mrf.mxu0
  %v1226 = vpop.f32.mrf.mxu0
  %1227 = vdwg.mxu0
  %v1228 = vpack.c.bf16 %v1175, %v1175
  %v1229 = vpack.c.bf16 %v1223, %v1223
  %s1230 = scalar_lea.vmem %s5, 12
  %v1231 = vld [vmem:[%s1230] sm:$0xf]
  %v1234 = vunpack.c.l.b16 %v1228
  %v1235 = vunpack.c.l.b16 %v1229
  %v1236 = vpack.c.b16 %v1235, %v1234
  %v1238 = vsel %vm182, %v1236, 0
  %v1241 = vsel %vm307, %v1231, 0
  %1243 = vmatprep.subr.bf16.mxu0 0
  %1244 = vmatpush1.bf16.msra.mxu0 0
  %1245 = vmatprep.subr.bf16.mxu0 0
  %1246 = vmatpush1.bf16.msra.mxu0 0
  %1247 = vmatprep.subr.bf16.mxu0 0
  %1248 = vmatpush1.bf16.msra.mxu0 0
  %1249 = vmatprep.subr.bf16.mxu0 0
  %1250 = vmatpush1.bf16.msra.mxu0 0
  %1251 = vmatprep.subr.bf16.mxu0 0
  %1252 = vmatpush1.bf16.msra.mxu0 0
  %1253 = vmatprep.subr.bf16.mxu0 0
  %1254 = vmatpush1.bf16.msra.mxu0 0
  %1255 = vmatprep.subr.bf16.mxu0 0
  %1256 = vmatpush1.bf16.msra.mxu0 0
  %1257 = vmatprep.subr.bf16.mxu0 0
  %1258 = vmatpush1.bf16.msra.mxu0 %v1241
  %1259 = vmatprep.subr.bf16.mxu0 0
  %1260 = vmatpush2.bf16.msra.mxu0 0
  %1261 = vmatprep.subr.bf16.mxu0 0
  %1262 = vmatpush2.bf16.msra.mxu0 0
  %1263 = vmatprep.subr.bf16.mxu0 0
  %1264 = vmatpush2.bf16.msra.mxu0 0
  %1265 = vmatprep.subr.bf16.mxu0 0
  %1266 = vmatpush2.bf16.msra.mxu0 0
  %1267 = vmatprep.subr.bf16.mxu0 0
  %1268 = vmatpush2.bf16.msra.mxu0 0
  %1269 = vmatprep.subr.bf16.mxu0 0
  %1270 = vmatpush2.bf16.msra.mxu0 0
  %1271 = vmatprep.subr.bf16.mxu0 0
  %1272 = vmatpush2.bf16.msra.mxu0 0
  %1273 = vmatprep.subr.bf16.mxu0 0
  %1274 = vmatpush2.bf16.msra.mxu0 0
  %1275 = vmatprep.mubr.bf16.mxu0 0
  %1276 = vmatmul.mubr.bf16.gmra.mxu0 %v1238
  %v1277 = vpop.f32.mrf.mxu0
  %v1278 = vadd.f32 0.0, %v1277
  %v1279 = vpop.f32.mrf.mxu0
  %v1280 = vpop.f32.mrf.mxu0
  %v1281 = vadd.f32 0.0, %v1280
  %v1282 = vpop.f32.mrf.mxu0
  %1283 = vdwg.mxu0
  %v1284 = vadd.f32 %v1006, %v1278
  %v1285 = vadd.f32 %v1007, %v1281
  %v1286 = vld [vmem:[%s6] sm:$0x1]
  %v1288 = vlaneseq
  %v1289 = vshrl.u32 %v1288, 7
  %v1290 = vsub.s32 0, %v1289
  %v1291 = vrot.slane %v1286, %v1290
  %v1293 = vadd.f32 %v1284, %v1291
  %v1294 = vadd.f32 %v1285, %v1291
  %v1295 = vadd.f32 %v45, %v1293
  %v1296 = vadd.f32 %v46, %v1294
  %v1297 = vld [vmem:[%s7] sm:$0x1]
  %v1298 = vld [vmem:[%s8] sm:$0x1]
  %v1299 = vsel %vm49, %v1295, 0.0
  %1300 = vadd.xlane.f32.xlu0 %v1299
  %v1301 = vpop.xlane.xlu0 %1300
  %v1302 = vsel %vm49, %v1296, 0.0
  %1303 = vadd.xlane.f32.xlu0 %v1302
  %v1304 = vpop.xlane.xlu0 %1303
  %v1305 = vmul.f32 %v1301, %v56
  %v1306 = vmul.f32 %v1304, %v56
  %v1307 = vsub.f32 %v1295, %v1305
  %v1308 = vsub.f32 %v1296, %v1306
  %v1309 = vmul.f32 %v1307, %v1307
  %v1310 = vmul.f32 %v1308, %v1308
  %v1311 = vsel %vm49, %v1309, 0.0
  %1312 = vadd.xlane.f32.xlu0 %v1311
  %v1313 = vpop.xlane.xlu0 %1312
  %v1314 = vsel %vm49, %v1310, 0.0
  %1315 = vadd.xlane.f32.xlu0 %v1314
  %v1316 = vpop.xlane.xlu0 %1315
  %v1317 = vmul.f32 %v1313, %v56
  %v1318 = vmul.f32 %v1316, %v56
  %v1319 = vadd.f32 %v1317, 1e-05
  %v1320 = vadd.f32 %v1318, 1e-05
  %v1321 = vrsqrt.pop %v1319
  %v1322 = vrsqrt.pop %v1320
  %v1323 = vmul.f32 %v1307, %v1321
  %v1324 = vmul.f32 %v1308, %v1322
  %v1326 = vlaneseq
  %v1327 = vshrl.u32 %v1326, 7
  %v1328 = vsub.s32 0, %v1327
  %v1329 = vrot.slane %v1297, %v1328
  %v1331 = vmul.f32 %v1323, %v1329
  %v1332 = vmul.f32 %v1324, %v1329
  %v1334 = vlaneseq
  %v1335 = vshrl.u32 %v1334, 7
  %v1336 = vsub.s32 0, %v1335
  %v1337 = vrot.slane %v1298, %v1336
  %v1339 = vadd.f32 %v1331, %v1337
  %v1340 = vadd.f32 %v1332, %v1337
  %v1341 = vpack.c.bf16 %v1339, %v1339
  %v1342 = vpack.c.bf16 %v1340, %v1340
  %v1343 = vld [vmem:[%s9] sm:$0xf]
  %v1344 = vld [vmem:[%s9 + $0x4] sm:$0xf]
  %v1345 = vld [vmem:[%s9 + $0x8] sm:$0xf]
  %v1346 = vld [vmem:[%s9 + $0xc] sm:$0xf]
  %v1347 = vld [vmem:[%s10] sm:$0x1]
  %v1349 = vlaneseq
  %v1350 = vshrl.u32 %v1349, 7
  %v1351 = vsub.s32 0, %v1350
  %v1352 = vrot.slane %v1347, %v1351
  %v1356 = vunpack.c.l.b16 %v1341
  %v1357 = vunpack.c.l.b16 %v1342
  %v1358 = vpack.c.b16 %v1357, %v1356
  %v1363 = vunpack.c.l.b16 %v1343
  %v1364 = vunpack.c.l.b16 %v1344
  %v1365 = vunpack.c.l.b16 %v1345
  %v1366 = vunpack.c.l.b16 %v1346
  %v1367 = vpack.c.b16 %v1364, %v1363
  %v1368 = vpack.c.b16 %v1366, %v1365
  %v1372 = vsel %vm49, %v1358, 0
  %1374 = vmatprep.subr.bf16.mxu0 0
  %1375 = vmatpush1.bf16.msra.mxu0 0
  %1376 = vmatprep.subr.bf16.mxu0 0
  %1377 = vmatpush1.bf16.msra.mxu0 0
  %1378 = vmatprep.subr.bf16.mxu0 0
  %1379 = vmatpush1.bf16.msra.mxu0 0
  %1380 = vmatprep.subr.bf16.mxu0 0
  %1381 = vmatpush1.bf16.msra.mxu0 0
  %1382 = vmatprep.subr.bf16.mxu0 0
  %1383 = vmatpush1.bf16.msra.mxu0 0
  %1384 = vmatprep.subr.bf16.mxu0 0
  %1385 = vmatpush1.bf16.msra.mxu0 0
  %1386 = vmatprep.subr.bf16.mxu0 0
  %1387 = vmatpush1.bf16.msra.mxu0 %v1368
  %1388 = vmatprep.subr.bf16.mxu0 0
  %1389 = vmatpush1.bf16.msra.mxu0 %v1367
  %1390 = vmatprep.subr.bf16.mxu0 0
  %1391 = vmatpush2.bf16.msra.mxu0 0
  %1392 = vmatprep.subr.bf16.mxu0 0
  %1393 = vmatpush2.bf16.msra.mxu0 0
  %1394 = vmatprep.subr.bf16.mxu0 0
  %1395 = vmatpush2.bf16.msra.mxu0 0
  %1396 = vmatprep.subr.bf16.mxu0 0
  %1397 = vmatpush2.bf16.msra.mxu0 0
  %1398 = vmatprep.subr.bf16.mxu0 0
  %1399 = vmatpush2.bf16.msra.mxu0 0
  %1400 = vmatprep.subr.bf16.mxu0 0
  %1401 = vmatpush2.bf16.msra.mxu0 0
  %1402 = vmatprep.subr.bf16.mxu0 0
  %1403 = vmatpush2.bf16.msra.mxu0 0
  %1404 = vmatprep.subr.bf16.mxu0 0
  %1405 = vmatpush2.bf16.msra.mxu0 0
  %1406 = vmatprep.mubr.bf16.mxu0 0
  %1407 = vmatmul.mubr.bf16.gmra.mxu0 %v1372
  %v1408 = vpop.f32.mrf.mxu0
  %v1409 = vadd.f32 %v1352, %v1408
  %v1410 = vpop.f32.mrf.mxu0
  %v1411 = vpop.f32.mrf.mxu0
  %v1412 = vadd.f32 %v1352, %v1411
  %v1413 = vpop.f32.mrf.mxu0
  %1414 = vdwg.mxu0
  %v1415 = vmul.f32 %v1409, 1.702
  %v1416 = vmul.f32 %v1412, 1.702
  %v1417 = vxor.u32 %v1415, 2147483648
  %v1418 = vxor.u32 %v1416, 2147483648
  %v1419 = vmul.f32 %v1417, 1.442695
  %v1420 = vpow.pop %v1419
  %v1421 = vmul.f32 %v1418, 1.442695
  %v1422 = vpow.pop %v1421
  %v1423 = vadd.f32 %v1420, 1.0
  %v1424 = vadd.f32 %v1422, 1.0
  %v1425 = vrcp.pop %v1423
  %v1426 = vmul.f32 1.0, %v1425
  %v1427 = vrcp.pop %v1424
  %v1428 = vmul.f32 1.0, %v1427
  %v1429 = vmul.f32 %v1409, %v1426
  %v1430 = vmul.f32 %v1412, %v1428
  %v1431 = vpack.c.bf16 %v1430, %v1429
  %v1432 = vld [vmem:[%s11] sm:$0xf]
  %v1433 = vld [vmem:[%s11 + $0x4] sm:$0xf]
  %v1434 = vld [vmem:[%s11 + $0x8] sm:$0xf]
  %v1435 = vld [vmem:[%s11 + $0xc] sm:$0xf]
  %v1436 = vld [vmem:[%s11 + $0x10] sm:$0xf]
  %v1437 = vld [vmem:[%s11 + $0x14] sm:$0xf]
  %v1438 = vld [vmem:[%s11 + $0x18] sm:$0xf]
  %v1439 = vld [vmem:[%s11 + $0x1c] sm:$0xf]
  %v1440 = vld [vmem:[%s11 + $0x20] sm:$0xf]
  %v1441 = vld [vmem:[%s11 + $0x24] sm:$0xf]
  %v1442 = vld [vmem:[%s11 + $0x28] sm:$0xf]
  %v1443 = vld [vmem:[%s11 + $0x2c] sm:$0xf]
  %v1444 = vld [vmem:[%s11 + $0x30] sm:$0xf]
  %v1445 = vld [vmem:[%s11 + $0x34] sm:$0xf]
  %v1446 = vld [vmem:[%s11 + $0x38] sm:$0xf]
  %v1447 = vld [vmem:[%s11 + $0x3c] sm:$0xf]
  %v1448 = vld [vmem:[%s12] sm:$0x1]
  %v1450 = vlaneseq
  %v1451 = vshrl.u32 %v1450, 7
  %v1452 = vsub.s32 0, %v1451
  %v1453 = vrot.slane %v1448, %v1452
  %v1471 = vunpack.c.l.b16 %v1432
  %v1472 = vunpack.c.l.b16 %v1433
  %v1473 = vunpack.c.l.b16 %v1434
  %v1474 = vunpack.c.l.b16 %v1435
  %v1475 = vunpack.c.l.b16 %v1436
  %v1476 = vunpack.c.l.b16 %v1437
  %v1477 = vunpack.c.l.b16 %v1438
  %v1478 = vunpack.c.l.b16 %v1439
  %v1479 = vunpack.c.l.b16 %v1440
  %v1480 = vunpack.c.l.b16 %v1441
  %v1481 = vunpack.c.l.b16 %v1442
  %v1482 = vunpack.c.l.b16 %v1443
  %v1483 = vunpack.c.l.b16 %v1444
  %v1484 = vunpack.c.l.b16 %v1445
  %v1485 = vunpack.c.l.b16 %v1446
  %v1486 = vunpack.c.l.b16 %v1447
  %v1487 = vpack.c.b16 %v1472, %v1471
  %v1488 = vpack.c.b16 %v1474, %v1473
  %v1489 = vpack.c.b16 %v1476, %v1475
  %v1490 = vpack.c.b16 %v1478, %v1477
  %v1491 = vpack.c.b16 %v1480, %v1479
  %v1492 = vpack.c.b16 %v1482, %v1481
  %v1493 = vpack.c.b16 %v1484, %v1483
  %v1494 = vpack.c.b16 %v1486, %v1485
  %1503 = vmatprep.subr.bf16.mxu0 0
  %1504 = vmatpush1.bf16.msra.mxu0 %v1494
  %1505 = vmatprep.subr.bf16.mxu0 0
  %1506 = vmatpush1.bf16.msra.mxu0 %v1493
  %1507 = vmatprep.subr.bf16.mxu0 0
  %1508 = vmatpush1.bf16.msra.mxu0 %v1492
  %1509 = vmatprep.subr.bf16.mxu0 0
  %1510 = vmatpush1.bf16.msra.mxu0 %v1491
  %1511 = vmatprep.subr.bf16.mxu0 0
  %1512 = vmatpush1.bf16.msra.mxu0 %v1490
  %1513 = vmatprep.subr.bf16.mxu0 0
  %1514 = vmatpush1.bf16.msra.mxu0 %v1489
  %1515 = vmatprep.subr.bf16.mxu0 0
  %1516 = vmatpush1.bf16.msra.mxu0 %v1488
  %1517 = vmatprep.subr.bf16.mxu0 0
  %1518 = vmatpush1.bf16.msra.mxu0 %v1487
  %1519 = vmatprep.subr.bf16.mxu0 0
  %1520 = vmatpush2.bf16.msra.mxu0 0
  %1521 = vmatprep.subr.bf16.mxu0 0
  %1522 = vmatpush2.bf16.msra.mxu0 0
  %1523 = vmatprep.subr.bf16.mxu0 0
  %1524 = vmatpush2.bf16.msra.mxu0 0
  %1525 = vmatprep.subr.bf16.mxu0 0
  %1526 = vmatpush2.bf16.msra.mxu0 0
  %1527 = vmatprep.subr.bf16.mxu0 0
  %1528 = vmatpush2.bf16.msra.mxu0 0
  %1529 = vmatprep.subr.bf16.mxu0 0
  %1530 = vmatpush2.bf16.msra.mxu0 0
  %1531 = vmatprep.subr.bf16.mxu0 0
  %1532 = vmatpush2.bf16.msra.mxu0 0
  %1533 = vmatprep.subr.bf16.mxu0 0
  %1534 = vmatpush2.bf16.msra.mxu0 0
  %1535 = vmatprep.mubr.bf16.mxu0 0
  %1536 = vmatmul.mubr.bf16.gmra.mxu0 %v1431
  %v1537 = vpop.f32.mrf.mxu0
  %v1538 = vadd.f32 %v1453, %v1537
  %v1539 = vpop.f32.mrf.mxu0
  %v1540 = vpop.f32.mrf.mxu0
  %v1541 = vadd.f32 %v1453, %v1540
  %v1542 = vpop.f32.mrf.mxu0
  %1543 = vdwg.mxu0
  %v1544 = vadd.f32 %v1295, %v1538
  %v1545 = vadd.f32 %v1296, %v1541
  %1546 = vst.msk [vmem:[%s13] sm:$0xff] %vm49, %v1544
  %1547 = vst.msk [vmem:[%s13 + $0x8] sm:$0xff] %vm49, %v1545
  // Predicated region
  $region54: #{transformer_forward.2} parent=0 // pred_check
    _
  $region55: #{transformer_forward.2} parent=0 // pred_check_branch
    %1549 = sbr.rel (0) target = $region57
  $region56: #{transformer_forward.2} parent=0 // pred_region
    _
  $region57: #{transformer_forward.2} parent=0 // pred_fallthru
    _
  // Predicated region
  $region58: #{transformer_forward.2} parent=0 // pred_check
    _
  $region59: #{transformer_forward.2} parent=0 // pred_check_branch
    %1551 = sbr.rel (0) target = $region61
  $region60: #{transformer_forward.2} parent=0 // pred_region
    _
  $region61: #{transformer_forward.2} parent=0 // pred_fallthru
    _

</llo_original>
